<compile_context>
chip_gen: v5e
topology: v5e:2x2
jax: 0.10.0
libtpu: 0.0.40
codegen_flags: <defaults>
</compile_context>

<pallas_src>
import functools

import jax
import jax.numpy as jnp
from jax.experimental import pallas as pl
from jax.experimental.pallas import tpu as pltpu


# ------------------------------ fused kernel ---------------------------------
def _resblock_kernel(x_ref, w1_ref, b1_ref, w2_ref, b2_ref, o_ref,
                     xb_ref, ypad_ref, stack_ref, *,
                     W, Wp, p, kh, kw, Lw, Lc, res_scale):
    # x_ref     : (1, C, Lp)   f32   flattened, spatially zero-padded input
    # w{1,2}_ref: (C, T*C)     bf16  tap-stacked weights  W[o, t*C + i]
    # b{1,2}_ref: (C, 1)       f32
    # o_ref     : (1, C, Lc)   f32   "wide" output (first Lw cols meaningful)
    # xb_ref    : (C, Lp)      bf16  scratch: bf16 copy of padded input
    # ypad_ref  : (C, Lp)      bf16  scratch: zero-bordered intermediate
    # stack_ref : (T*C, Lc)    bf16  scratch: stacked MXU operand (reused)
    C = x_ref.shape[1]
    Lp = x_ref.shape[2]
    lead = p * Wp + p                       # flat offset of (h=0, w=0)
    taps = [(di, dj) for di in range(kh) for dj in range(kw)]

    # Single f32 -> bf16 cast of the padded input (one VPU pass).
    xb_ref[...] = x_ref[0].astype(jnp.bfloat16)

    # ---- conv1: build stacked operand, then ONE big-K MXU matmul ----
    for t, (di, dj) in enumerate(taps):
        off = di * Wp + dj
        stack_ref[t * C:(t + 1) * C, :] = xb_ref[:, off:off + Lc]
    acc = jnp.dot(w1_ref[...], stack_ref[...],
                  preferred_element_type=jnp.float32)        # (C, Lc) f32

    # bias + ReLU; zero the W-padding columns and the lane-padding tail so
    # they act as zero padding for conv2 (mask generated in-kernel).
    cols = jax.lax.broadcasted_iota(jnp.int32, (1, Lc), 1)
    valid = jnp.logical_and(cols % Wp < W, cols < Lw).astype(jnp.float32)
    y = jnp.maximum(acc + b1_ref[...], 0.0) * valid

    # Re-embed y into a zero-bordered flattened (Hp, Wp) frame (bf16, VMEM).
    # Only the small strips outside the written window need explicit zeroing.
    if lead > 0:
        ypad_ref[:, :lead] = jnp.zeros((C, lead), ypad_ref.dtype)
    if Lp > lead + Lc:
        ypad_ref[:, lead + Lc:] = jnp.zeros((C, Lp - lead - Lc), ypad_ref.dtype)
    ypad_ref[:, lead:lead + Lc] = y.astype(jnp.bfloat16)

    # ---- conv2: stacked operand again (already bf16), one matmul ----
    for t, (di, dj) in enumerate(taps):
        off = di * Wp + dj
        stack_ref[t * C:(t + 1) * C, :] = ypad_ref[:, off:off + Lc]
    z = jnp.dot(w2_ref[...], stack_ref[...],
                preferred_element_type=jnp.float32) + b2_ref[...]

    # ---- residual: res_scale * body(x) + x  (residual kept in full f32) ----
    x_res = x_ref[0, :, lead:lead + Lc]
    o_ref[0] = (z * res_scale + x_res).astype(o_ref.dtype)


# -------------------------------- wrapper -------------------------------------
def resblock_forward(x, w1, b1, w2, b2, *, res_scale=1.0):
    """x: (N, C, H, W) f32; w*: (C, C, k, k); b*: (C,).  Returns (N, C, H, W)."""
    N, C, H, W = x.shape
    Cout, Cin, kh, kw = w1.shape
    assert Cout == C and Cin == C and w2.shape == w1.shape
    assert kh % 2 == 1 and kw % 2 == 1, "ResBlock 'same' conv assumes odd kernel_size"
    p = kh // 2                              # 'same' padding (default_conv)
    Hp, Wp = H + 2 * p, W + 2 * p
    Lw = H * Wp                              # wide row length (valid cols: c % Wp < W)
    T = kh * kw

    # Lane-dense (multiple-of-128) compute width and padded-input width.
    Lc = ((Lw + 127) // 128) * 128
    max_off = (kh - 1) * Wp + (kw - 1)
    Lp = ((max(max_off + Lc, Hp * Wp) + 127) // 128) * 128

    # Cheap layout prep (no im2col): border-pad, flatten spatial dims, and
    # zero-extend the lane axis to Lp.
    xflat = jnp.pad(x.astype(jnp.float32),
                    ((0, 0), (0, 0), (p, p), (p, p))).reshape(N, C, Hp * Wp)
    xflat = jnp.pad(xflat, ((0, 0), (0, 0), (0, Lp - Hp * Wp)))

    # Tap-stacked weights: Ws[o, t*C + i] = w[o, i, di, dj],  t = di*kw + dj.
    w1s = jnp.transpose(w1, (0, 2, 3, 1)).reshape(C, T * C).astype(jnp.bfloat16)
    w2s = jnp.transpose(w2, (0, 2, 3, 1)).reshape(C, T * C).astype(jnp.bfloat16)
    b1c = b1.reshape(C, 1).astype(jnp.float32)
    b2c = b2.reshape(C, 1).astype(jnp.float32)

    flops = 2 * 2 * (T * C) * C * H * W * N                  # two convs
    bytes_accessed = (xflat.size * 4 + w1s.size * 2 + w2s.size * 2 +
                      b1c.size * 4 + b2c.size * 4 + N * C * Lc * 4)

    kernel = functools.partial(_resblock_kernel, W=W, Wp=Wp, p=p, kh=kh, kw=kw,
                               Lw=Lw, Lc=Lc, res_scale=float(res_scale))
    out_wide = pl.pallas_call(
        kernel,
        out_shape=jax.ShapeDtypeStruct((N, C, Lc), jnp.float32),
        grid=(N,),
        in_specs=[
            pl.BlockSpec((1, C, Lp), lambda n: (n, 0, 0)),   # x (one sample/step)
            pl.BlockSpec((C, T * C), lambda n: (0, 0)),      # w1 (resident)
            pl.BlockSpec((C, 1),     lambda n: (0, 0)),      # b1
            pl.BlockSpec((C, T * C), lambda n: (0, 0)),      # w2 (resident)
            pl.BlockSpec((C, 1),     lambda n: (0, 0)),      # b2
        ],
        out_specs=pl.BlockSpec((1, C, Lc), lambda n: (n, 0, 0)),
        scratch_shapes=[
            pltpu.VMEM((C, Lp), jnp.bfloat16),               # bf16 padded input
            pltpu.VMEM((C, Lp), jnp.bfloat16),               # padded intermediate
            pltpu.VMEM((T * C, Lc), jnp.bfloat16),           # stacked MXU operand
        ],
        compiler_params=pltpu.CompilerParams(
            dimension_semantics=("parallel",)),
        cost_estimate=pl.CostEstimate(flops=flops, transcendentals=0,
                                      bytes_accessed=bytes_accessed),
    )(xflat, w1s, b1c, w2s, b2c)

    # Layout plumbing outside the kernel: drop lane-padding tail and W-pad cols.
    return out_wide[:, :, :Lw].reshape(N, C, H, Wp)[:, :, :, :W]


# --------------------------------- main ---------------------------------------
if __name__ == "__main__":
    n_feats, kernel_size = 32, 3
    N, H, W = 2, 16, 16
    res_scale = 0.1

    key = jax.random.PRNGKey(0)
    kx, k1, kb1, k2, kb2 = jax.random.split(key, 5)
    fan_in = n_feats * kernel_size * kernel_size
    wstd = (2.0 / fan_in) ** 0.5
    x = jax.random.normal(kx, (N, n_feats, H, W), dtype=jnp.float32)
    w1 = wstd * jax.random.normal(
        k1, (n_feats, n_feats, kernel_size, kernel_size), jnp.float32)
    b1 = 0.1 * jax.random.normal(kb1, (n_feats,), jnp.float32)
    w2 = wstd * jax.random.normal(
        k2, (n_feats, n_feats, kernel_size, kernel_size), jnp.float32)
    b2 = 0.1 * jax.random.normal(kb2, (n_feats,), jnp.float32)

    fwd = jax.jit(functools.partial(resblock_forward, res_scale=res_scale))
    out = jax.block_until_ready(fwd(x, w1, b1, w2, b2))

    # Reference: identical math with bf16-rounded matmul operands (mirrors the
    # kernel's bf16 MXU feed) and f32 accumulation via precision=HIGHEST.
    p = kernel_size // 2

    def conv2d(x_, w_):
        return jax.lax.conv_general_dilated(
            x_, w_, window_strides=(1, 1),
            padding=[(p, p), (p, p)],
            dimension_numbers=("NCHW", "OIHW", "NCHW"),
            precision=jax.lax.Precision.HIGHEST)

    q = lambda a: a.astype(jnp.bfloat16).astype(jnp.float32)
    y_ref = jnp.maximum(conv2d(q(x), q(w1)) + b1[None, :, None, None], 0.0)
    z_ref = conv2d(q(y_ref), q(w2)) + b2[None, :, None, None]
    ref = z_ref * res_scale + x

    assert out.shape == ref.shape
    err = float(jnp.max(jnp.abs(out - ref)))
    assert jnp.allclose(out, ref, atol=2e-3, rtol=2e-3), f"max abs err = {err}"

    print("KERNEL_OK")
</pallas_src>

<mosaic_0001>
module attributes {stable_mosaic.version = 11 : i64} {
  func.func @_resblock_kernel(%arg0: i32, %arg1: memref<1x32x512xf32, #tpu.memory_space<vmem>>, %arg2: memref<32x288xbf16, #tpu.memory_space<vmem>>, %arg3: memref<32x1xf32, #tpu.memory_space<vmem>>, %arg4: memref<32x288xbf16, #tpu.memory_space<vmem>>, %arg5: memref<32x1xf32, #tpu.memory_space<vmem>>, %arg6: memref<1x32x384xf32, #tpu.memory_space<vmem>>, %arg7: memref<32x512xbf16, #tpu.memory_space<vmem>>, %arg8: memref<32x512xbf16, #tpu.memory_space<vmem>>, %arg9: memref<288x384xbf16, #tpu.memory_space<vmem>>) attributes {dimension_semantics = [#tpu.dimension_semantics<parallel>], iteration_bounds = array<i64: 2>, scalar_prefetch = 0 : i64, scratch_operands = 3 : i64, tpu.core_type = #tpu.core_type<tc>, window_params = [{transform_indices = @transform_0, window_bounds = array<i64: 1, 32, 512>}, {pipeline_mode = #tpu.pipeline_mode<synchronous>, transform_indices = @transform_1, window_bounds = array<i64: 32, 288>}, {pipeline_mode = #tpu.pipeline_mode<synchronous>, transform_indices = @transform_2, window_bounds = array<i64: 32, 1>}, {pipeline_mode = #tpu.pipeline_mode<synchronous>, transform_indices = @transform_3, window_bounds = array<i64: 32, 288>}, {pipeline_mode = #tpu.pipeline_mode<synchronous>, transform_indices = @transform_4, window_bounds = array<i64: 32, 1>}, {transform_indices = @transform_5, window_bounds = array<i64: 1, 32, 384>}]} {
    %c0 = arith.constant 0 : index
    %c0_0 = arith.constant 0 : index
    %c0_1 = arith.constant 0 : index
    %0 = vector.load %arg1[%c0, %c0_0, %c0_1] : memref<1x32x512xf32, #tpu.memory_space<vmem>>, vector<1x32x512xf32>
    %1 = vector.shape_cast %0 : vector<1x32x512xf32> to vector<32x512xf32>
    %2 = arith.truncf %1 : vector<32x512xf32> to vector<32x512xbf16>
    %c0_2 = arith.constant 0 : index
    %c0_3 = arith.constant 0 : index
    %3 = vector.load %arg7[%c0_2, %c0_3] : memref<32x512xbf16, #tpu.memory_space<vmem>>, vector<32x512xbf16>
    tpu.vector_store %arg7[%c0_2, %c0_3], %2 {strides = array<i32>} : memref<32x512xbf16, #tpu.memory_space<vmem>>, vector<32x512xbf16>,
    %c0_4 = arith.constant 0 : index
    %c0_5 = arith.constant 0 : index
    %4 = vector.load %arg7[%c0_4, %c0_5] : memref<32x512xbf16, #tpu.memory_space<vmem>>, vector<32x384xbf16>
    %c0_6 = arith.constant 0 : index
    %c0_7 = arith.constant 0 : index
    %5 = vector.load %arg9[%c0_6, %c0_7] : memref<288x384xbf16, #tpu.memory_space<vmem>>, vector<32x384xbf16>
    tpu.vector_store %arg9[%c0_6, %c0_7], %4 {strides = array<i32>} : memref<288x384xbf16, #tpu.memory_space<vmem>>, vector<32x384xbf16>,
    %c0_8 = arith.constant 0 : index
    %c1 = arith.constant 1 : index
    %6 = vector.load %arg7[%c0_8, %c1] : memref<32x512xbf16, #tpu.memory_space<vmem>>, vector<32x384xbf16>
    %c32 = arith.constant 32 : index
    %c0_9 = arith.constant 0 : index
    %7 = vector.load %arg9[%c32, %c0_9] : memref<288x384xbf16, #tpu.memory_space<vmem>>, vector<32x384xbf16>
    tpu.vector_store %arg9[%c32, %c0_9], %6 {strides = array<i32>} : memref<288x384xbf16, #tpu.memory_space<vmem>>, vector<32x384xbf16>,
    %c0_10 = arith.constant 0 : index
    %c2 = arith.constant 2 : index
    %8 = vector.load %arg7[%c0_10, %c2] : memref<32x512xbf16, #tpu.memory_space<vmem>>, vector<32x384xbf16>
    %c64 = arith.constant 64 : index
    %c0_11 = arith.constant 0 : index
    %9 = vector.load %arg9[%c64, %c0_11] : memref<288x384xbf16, #tpu.memory_space<vmem>>, vector<32x384xbf16>
    tpu.vector_store %arg9[%c64, %c0_11], %8 {strides = array<i32>} : memref<288x384xbf16, #tpu.memory_space<vmem>>, vector<32x384xbf16>,
    %c0_12 = arith.constant 0 : index
    %c18 = arith.constant 18 : index
    %10 = vector.load %arg7[%c0_12, %c18] : memref<32x512xbf16, #tpu.memory_space<vmem>>, vector<32x384xbf16>
    %c96 = arith.constant 96 : index
    %c0_13 = arith.constant 0 : index
    %11 = vector.load %arg9[%c96, %c0_13] : memref<288x384xbf16, #tpu.memory_space<vmem>>, vector<32x384xbf16>
    tpu.vector_store %arg9[%c96, %c0_13], %10 {strides = array<i32>} : memref<288x384xbf16, #tpu.memory_space<vmem>>, vector<32x384xbf16>,
    %c0_14 = arith.constant 0 : index
    %c19 = arith.constant 19 : index
    %12 = vector.load %arg7[%c0_14, %c19] : memref<32x512xbf16, #tpu.memory_space<vmem>>, vector<32x384xbf16>
    %c128 = arith.constant 128 : index
    %c0_15 = arith.constant 0 : index
    %13 = vector.load %arg9[%c128, %c0_15] : memref<288x384xbf16, #tpu.memory_space<vmem>>, vector<32x384xbf16>
    tpu.vector_store %arg9[%c128, %c0_15], %12 {strides = array<i32>} : memref<288x384xbf16, #tpu.memory_space<vmem>>, vector<32x384xbf16>,
    %c0_16 = arith.constant 0 : index
    %c20 = arith.constant 20 : index
    %14 = vector.load %arg7[%c0_16, %c20] : memref<32x512xbf16, #tpu.memory_space<vmem>>, vector<32x384xbf16>
    %c160 = arith.constant 160 : index
    %c0_17 = arith.constant 0 : index
    %15 = vector.load %arg9[%c160, %c0_17] : memref<288x384xbf16, #tpu.memory_space<vmem>>, vector<32x384xbf16>
    tpu.vector_store %arg9[%c160, %c0_17], %14 {strides = array<i32>} : memref<288x384xbf16, #tpu.memory_space<vmem>>, vector<32x384xbf16>,
    %c0_18 = arith.constant 0 : index
    %c36 = arith.constant 36 : index
    %16 = vector.load %arg7[%c0_18, %c36] : memref<32x512xbf16, #tpu.memory_space<vmem>>, vector<32x384xbf16>
    %c192 = arith.constant 192 : index
    %c0_19 = arith.constant 0 : index
    %17 = vector.load %arg9[%c192, %c0_19] : memref<288x384xbf16, #tpu.memory_space<vmem>>, vector<32x384xbf16>
    tpu.vector_store %arg9[%c192, %c0_19], %16 {strides = array<i32>} : memref<288x384xbf16, #tpu.memory_space<vmem>>, vector<32x384xbf16>,
    %c0_20 = arith.constant 0 : index
    %c37 = arith.constant 37 : index
    %18 = vector.load %arg7[%c0_20, %c37] : memref<32x512xbf16, #tpu.memory_space<vmem>>, vector<32x384xbf16>
    %c224 = arith.constant 224 : index
    %c0_21 = arith.constant 0 : index
    %19 = vector.load %arg9[%c224, %c0_21] : memref<288x384xbf16, #tpu.memory_space<vmem>>, vector<32x384xbf16>
    tpu.vector_store %arg9[%c224, %c0_21], %18 {strides = array<i32>} : memref<288x384xbf16, #tpu.memory_space<vmem>>, vector<32x384xbf16>,
    %c0_22 = arith.constant 0 : index
    %c38 = arith.constant 38 : index
    %20 = vector.load %arg7[%c0_22, %c38] : memref<32x512xbf16, #tpu.memory_space<vmem>>, vector<32x384xbf16>
    %c256 = arith.constant 256 : index
    %c0_23 = arith.constant 0 : index
    %21 = vector.load %arg9[%c256, %c0_23] : memref<288x384xbf16, #tpu.memory_space<vmem>>, vector<32x384xbf16>
    tpu.vector_store %arg9[%c256, %c0_23], %20 {strides = array<i32>} : memref<288x384xbf16, #tpu.memory_space<vmem>>, vector<32x384xbf16>,
    %c0_24 = arith.constant 0 : index
    %c0_25 = arith.constant 0 : index
    %22 = vector.load %arg2[%c0_24, %c0_25] : memref<32x288xbf16, #tpu.memory_space<vmem>>, vector<32x288xbf16>
    %c0_26 = arith.constant 0 : index
    %c0_27 = arith.constant 0 : index
    %23 = vector.load %arg9[%c0_26, %c0_27] : memref<288x384xbf16, #tpu.memory_space<vmem>>, vector<288x384xbf16>
    %cst = arith.constant dense<0.000000e+00> : vector<32x384xf32>
    %24 = tpu.matmul %22, %23, %cst {dimension_numbers = #tpu.dot_dimension_numbers<[1], [0], [0], [1], [0, 0, 1, 1], [], []>} : vector<32x288xbf16>, vector<288x384xbf16>, vector<32x384xf32> -> vector<32x384xf32>
    %25 = tpu.iota {dimensions = array<i32: 1>} : vector<1x384xi32>
    %c18_i32 = arith.constant 18 : i32
    %c0_i32 = arith.constant 0 : i32
    %26 = arith.cmpi eq, %c18_i32, %c0_i32 : i32
    %c1_i32 = arith.constant 1 : i32
    %27 = arith.select %26, %c1_i32, %c18_i32 : i32
    %28 = vector.broadcast %27 : i32 to vector<1x384xi32>
    %29 = arith.remsi %25, %28 : vector<1x384xi32>
    %c0_i32_28 = arith.constant 0 : i32
    %30 = vector.broadcast %c0_i32_28 : i32 to vector<1x384xi32>
    %31 = arith.cmpi ne, %29, %30 : vector<1x384xi32>
    %c0_i32_29 = arith.constant 0 : i32
    %32 = vector.broadcast %c0_i32_29 : i32 to vector<1x384xi32>
    %33 = arith.cmpi slt, %29, %32 : vector<1x384xi32>
    %c0_i32_30 = arith.constant 0 : i32
    %34 = arith.cmpi slt, %27, %c0_i32_30 : i32
    %35 = vector.broadcast %34 : i1 to vector<1x384xi1>
    %36 = vector.broadcast %35 : vector<1x384xi1> to vector<1x384xi1>
    %37 = arith.xori %33, %36 : vector<1x384xi1>
    %38 = arith.andi %37, %31 : vector<1x384xi1>
    %39 = vector.broadcast %27 : i32 to vector<1x384xi32>
    %40 = arith.addi %29, %39 : vector<1x384xi32>
    %41 = arith.select %38, %40, %29 : vector<1x384xi1>, vector<1x384xi32>
    %c16_i32 = arith.constant 16 : i32
    %42 = vector.broadcast %c16_i32 : i32 to vector<1x384xi32>
    %43 = arith.cmpi slt, %41, %42 : vector<1x384xi32>
    %c288_i32 = arith.constant 288 : i32
    %44 = vector.broadcast %c288_i32 : i32 to vector<1x384xi32>
    %45 = arith.cmpi slt, %25, %44 : vector<1x384xi32>
    %46 = arith.andi %43, %45 : vector<1x384xi1>
    %47 = arith.extui %46 : vector<1x384xi1> to vector<1x384xi32>
    %48 = arith.sitofp %47 : vector<1x384xi32> to vector<1x384xf32>
    %c0_31 = arith.constant 0 : index
    %c0_32 = arith.constant 0 : index
    %49 = vector.load %arg3[%c0_31, %c0_32] : memref<32x1xf32, #tpu.memory_space<vmem>>, vector<32x1xf32>
    %50 = vector.broadcast %49 : vector<32x1xf32> to vector<32x384xf32>
    %51 = arith.addf %24, %50 : vector<32x384xf32>
    %cst_33 = arith.constant 0.000000e+00 : f32
    %52 = vector.broadcast %cst_33 : f32 to vector<32x384xf32>
    %53 = arith.maximumf %51, %52 : vector<32x384xf32>
    %54 = vector.broadcast %48 : vector<1x384xf32> to vector<32x384xf32>
    %55 = arith.mulf %53, %54 : vector<32x384xf32>
    %cst_34 = arith.constant 0.000000e+00 : bf16
    %56 = vector.broadcast %cst_34 : bf16 to vector<32x19xbf16>
    %c0_35 = arith.constant 0 : index
    %c0_36 = arith.constant 0 : index
    %57 = vector.load %arg8[%c0_35, %c0_36] : memref<32x512xbf16, #tpu.memory_space<vmem>>, vector<32x19xbf16>
    tpu.vector_store %arg8[%c0_35, %c0_36], %56 {strides = array<i32>} : memref<32x512xbf16, #tpu.memory_space<vmem>>, vector<32x19xbf16>,
    %cst_37 = arith.constant 0.000000e+00 : bf16
    %58 = vector.broadcast %cst_37 : bf16 to vector<32x109xbf16>
    %c0_38 = arith.constant 0 : index
    %c403 = arith.constant 403 : index
    %59 = vector.load %arg8[%c0_38, %c403] : memref<32x512xbf16, #tpu.memory_space<vmem>>, vector<32x109xbf16>
    tpu.vector_store %arg8[%c0_38, %c403], %58 {strides = array<i32>} : memref<32x512xbf16, #tpu.memory_space<vmem>>, vector<32x109xbf16>,
    %60 = arith.truncf %55 : vector<32x384xf32> to vector<32x384xbf16>
    %c0_39 = arith.constant 0 : index
    %c19_40 = arith.constant 19 : index
    %61 = vector.load %arg8[%c0_39, %c19_40] : memref<32x512xbf16, #tpu.memory_space<vmem>>, vector<32x384xbf16>
    tpu.vector_store %arg8[%c0_39, %c19_40], %60 {strides = array<i32>} : memref<32x512xbf16, #tpu.memory_space<vmem>>, vector<32x384xbf16>,
    %c0_41 = arith.constant 0 : index
    %c0_42 = arith.constant 0 : index
    %62 = vector.load %arg8[%c0_41, %c0_42] : memref<32x512xbf16, #tpu.memory_space<vmem>>, vector<32x384xbf16>
    %c0_43 = arith.constant 0 : index
    %c0_44 = arith.constant 0 : index
    %63 = vector.load %arg9[%c0_43, %c0_44] : memref<288x384xbf16, #tpu.memory_space<vmem>>, vector<32x384xbf16>
    tpu.vector_store %arg9[%c0_43, %c0_44], %62 {strides = array<i32>} : memref<288x384xbf16, #tpu.memory_space<vmem>>, vector<32x384xbf16>,
    %c0_45 = arith.constant 0 : index
    %c1_46 = arith.constant 1 : index
    %64 = vector.load %arg8[%c0_45, %c1_46] : memref<32x512xbf16, #tpu.memory_space<vmem>>, vector<32x384xbf16>
    %c32_47 = arith.constant 32 : index
    %c0_48 = arith.constant 0 : index
    %65 = vector.load %arg9[%c32_47, %c0_48] : memref<288x384xbf16, #tpu.memory_space<vmem>>, vector<32x384xbf16>
    tpu.vector_store %arg9[%c32_47, %c0_48], %64 {strides = array<i32>} : memref<288x384xbf16, #tpu.memory_space<vmem>>, vector<32x384xbf16>,
    %c0_49 = arith.constant 0 : index
    %c2_50 = arith.constant 2 : index
    %66 = vector.load %arg8[%c0_49, %c2_50] : memref<32x512xbf16, #tpu.memory_space<vmem>>, vector<32x384xbf16>
    %c64_51 = arith.constant 64 : index
    %c0_52 = arith.constant 0 : index
    %67 = vector.load %arg9[%c64_51, %c0_52] : memref<288x384xbf16, #tpu.memory_space<vmem>>, vector<32x384xbf16>
    tpu.vector_store %arg9[%c64_51, %c0_52], %66 {strides = array<i32>} : memref<288x384xbf16, #tpu.memory_space<vmem>>, vector<32x384xbf16>,
    %c0_53 = arith.constant 0 : index
    %c18_54 = arith.constant 18 : index
    %68 = vector.load %arg8[%c0_53, %c18_54] : memref<32x512xbf16, #tpu.memory_space<vmem>>, vector<32x384xbf16>
    %c96_55 = arith.constant 96 : index
    %c0_56 = arith.constant 0 : index
    %69 = vector.load %arg9[%c96_55, %c0_56] : memref<288x384xbf16, #tpu.memory_space<vmem>>, vector<32x384xbf16>
    tpu.vector_store %arg9[%c96_55, %c0_56], %68 {strides = array<i32>} : memref<288x384xbf16, #tpu.memory_space<vmem>>, vector<32x384xbf16>,
    %c0_57 = arith.constant 0 : index
    %c19_58 = arith.constant 19 : index
    %70 = vector.load %arg8[%c0_57, %c19_58] : memref<32x512xbf16, #tpu.memory_space<vmem>>, vector<32x384xbf16>
    %c128_59 = arith.constant 128 : index
    %c0_60 = arith.constant 0 : index
    %71 = vector.load %arg9[%c128_59, %c0_60] : memref<288x384xbf16, #tpu.memory_space<vmem>>, vector<32x384xbf16>
    tpu.vector_store %arg9[%c128_59, %c0_60], %70 {strides = array<i32>} : memref<288x384xbf16, #tpu.memory_space<vmem>>, vector<32x384xbf16>,
    %c0_61 = arith.constant 0 : index
    %c20_62 = arith.constant 20 : index
    %72 = vector.load %arg8[%c0_61, %c20_62] : memref<32x512xbf16, #tpu.memory_space<vmem>>, vector<32x384xbf16>
    %c160_63 = arith.constant 160 : index
    %c0_64 = arith.constant 0 : index
    %73 = vector.load %arg9[%c160_63, %c0_64] : memref<288x384xbf16, #tpu.memory_space<vmem>>, vector<32x384xbf16>
    tpu.vector_store %arg9[%c160_63, %c0_64], %72 {strides = array<i32>} : memref<288x384xbf16, #tpu.memory_space<vmem>>, vector<32x384xbf16>,
    %c0_65 = arith.constant 0 : index
    %c36_66 = arith.constant 36 : index
    %74 = vector.load %arg8[%c0_65, %c36_66] : memref<32x512xbf16, #tpu.memory_space<vmem>>, vector<32x384xbf16>
    %c192_67 = arith.constant 192 : index
    %c0_68 = arith.constant 0 : index
    %75 = vector.load %arg9[%c192_67, %c0_68] : memref<288x384xbf16, #tpu.memory_space<vmem>>, vector<32x384xbf16>
    tpu.vector_store %arg9[%c192_67, %c0_68], %74 {strides = array<i32>} : memref<288x384xbf16, #tpu.memory_space<vmem>>, vector<32x384xbf16>,
    %c0_69 = arith.constant 0 : index
    %c37_70 = arith.constant 37 : index
    %76 = vector.load %arg8[%c0_69, %c37_70] : memref<32x512xbf16, #tpu.memory_space<vmem>>, vector<32x384xbf16>
    %c224_71 = arith.constant 224 : index
    %c0_72 = arith.constant 0 : index
    %77 = vector.load %arg9[%c224_71, %c0_72] : memref<288x384xbf16, #tpu.memory_space<vmem>>, vector<32x384xbf16>
    tpu.vector_store %arg9[%c224_71, %c0_72], %76 {strides = array<i32>} : memref<288x384xbf16, #tpu.memory_space<vmem>>, vector<32x384xbf16>,
    %c0_73 = arith.constant 0 : index
    %c38_74 = arith.constant 38 : index
    %78 = vector.load %arg8[%c0_73, %c38_74] : memref<32x512xbf16, #tpu.memory_space<vmem>>, vector<32x384xbf16>
    %c256_75 = arith.constant 256 : index
    %c0_76 = arith.constant 0 : index
    %79 = vector.load %arg9[%c256_75, %c0_76] : memref<288x384xbf16, #tpu.memory_space<vmem>>, vector<32x384xbf16>
    tpu.vector_store %arg9[%c256_75, %c0_76], %78 {strides = array<i32>} : memref<288x384xbf16, #tpu.memory_space<vmem>>, vector<32x384xbf16>,
    %c0_77 = arith.constant 0 : index
    %c0_78 = arith.constant 0 : index
    %80 = vector.load %arg4[%c0_77, %c0_78] : memref<32x288xbf16, #tpu.memory_space<vmem>>, vector<32x288xbf16>
    %c0_79 = arith.constant 0 : index
    %c0_80 = arith.constant 0 : index
    %81 = vector.load %arg9[%c0_79, %c0_80] : memref<288x384xbf16, #tpu.memory_space<vmem>>, vector<288x384xbf16>
    %cst_81 = arith.constant dense<0.000000e+00> : vector<32x384xf32>
    %82 = tpu.matmul %80, %81, %cst_81 {dimension_numbers = #tpu.dot_dimension_numbers<[1], [0], [0], [1], [0, 0, 1, 1], [], []>} : vector<32x288xbf16>, vector<288x384xbf16>, vector<32x384xf32> -> vector<32x384xf32>
    %c0_82 = arith.constant 0 : index
    %c0_83 = arith.constant 0 : index
    %83 = vector.load %arg5[%c0_82, %c0_83] : memref<32x1xf32, #tpu.memory_space<vmem>>, vector<32x1xf32>
    %84 = vector.broadcast %83 : vector<32x1xf32> to vector<32x384xf32>
    %85 = arith.addf %82, %84 : vector<32x384xf32>
    %c0_84 = arith.constant 0 : index
    %c0_85 = arith.constant 0 : index
    %c19_86 = arith.constant 19 : index
    %86 = vector.load %arg1[%c0_84, %c0_85, %c19_86] : memref<1x32x512xf32, #tpu.memory_space<vmem>>, vector<1x32x384xf32>
    %87 = vector.shape_cast %86 : vector<1x32x384xf32> to vector<32x384xf32>
    %cst_87 = arith.constant 1.000000e-01 : f32
    %88 = vector.broadcast %cst_87 : f32 to vector<32x384xf32>
    %89 = arith.mulf %85, %88 : vector<32x384xf32>
    %90 = arith.addf %89, %87 : vector<32x384xf32>
    %c0_88 = arith.constant 0 : index
    %c0_89 = arith.constant 0 : index
    %c0_90 = arith.constant 0 : index
    %91 = vector.load %arg6[%c0_88, %c0_89, %c0_90] : memref<1x32x384xf32, #tpu.memory_space<vmem>>, vector<1x32x384xf32>
    %92 = vector.shape_cast %91 : vector<1x32x384xf32> to vector<32x384xf32>
    %93 = vector.shape_cast %90 : vector<32x384xf32> to vector<1x32x384xf32>
    tpu.vector_store %arg6[%c0_88, %c0_89, %c0_90], %93 {strides = array<i32>} : memref<1x32x384xf32, #tpu.memory_space<vmem>>, vector<1x32x384xf32>,
    return
  }
  func.func @transform_0(%arg0: i32) -> (i32, i32, i32) {
    %c0_i32 = arith.constant 0 : i32
    %c0_i32_0 = arith.constant 0 : i32
    %c0_i32_1 = arith.constant 0 : i32
    return %arg0, %c0_i32, %c0_i32_0 : i32, i32, i32
  }
  func.func @transform_1(%arg0: i32) -> (i32, i32) {
    %c0_i32 = arith.constant 0 : i32
    %c0_i32_0 = arith.constant 0 : i32
    %c0_i32_1 = arith.constant 0 : i32
    return %c0_i32, %c0_i32_0 : i32, i32
  }
  func.func @transform_2(%arg0: i32) -> (i32, i32) {
    %c0_i32 = arith.constant 0 : i32
    %c0_i32_0 = arith.constant 0 : i32
    %c0_i32_1 = arith.constant 0 : i32
    return %c0_i32, %c0_i32_0 : i32, i32
  }
  func.func @transform_3(%arg0: i32) -> (i32, i32) {
    %c0_i32 = arith.constant 0 : i32
    %c0_i32_0 = arith.constant 0 : i32
    %c0_i32_1 = arith.constant 0 : i32
    return %c0_i32, %c0_i32_0 : i32, i32
  }
  func.func @transform_4(%arg0: i32) -> (i32, i32) {
    %c0_i32 = arith.constant 0 : i32
    %c0_i32_0 = arith.constant 0 : i32
    %c0_i32_1 = arith.constant 0 : i32
    return %c0_i32, %c0_i32_0 : i32, i32
  }
  func.func @transform_5(%arg0: i32) -> (i32, i32, i32) {
    %c0_i32 = arith.constant 0 : i32
    %c0_i32_0 = arith.constant 0 : i32
    %c0_i32_1 = arith.constant 0 : i32
    return %arg0, %c0_i32, %c0_i32_0 : i32, i32, i32
  }
}

</mosaic_0001>

<llo_original>
// kernel: resblock_forward.1
$region0: #{resblock_forward.1}
  #allocation0 [shape = 'u32[]', space=smem, size = 0x4, offset = 0x4, fixed_abs, tag = 'smem constant byte address 0x4 - core index']
  #allocation1 [shape = 'u32[72,128]{1,0:T(1,128)}', space=vmem, size = 0x9000, scoped, tag = 'internal scratch']
  #allocation2 [shape = 'bf16[32,512]{1,0:T(8,128)(2,1)}', space=vmem, size = 0x8000, scoped, tag = 'scratch operand']
  #allocation3 [shape = 'bf16[32,512]{1,0:T(8,128)(2,1)}', space=vmem, size = 0x8000, scoped, tag = 'scratch operand']
  #allocation4 [shape = 'bf16[288,384]{1,0:T(8,128)(2,1)}', space=vmem, size = 0x36000, scoped, tag = 'scratch operand']
  %s0 = inlined_call_operand.vmem [shape: f32[2,32,512], index: 0, kind: input, shape index: {}]
  %s1 = inlined_call_operand.vmem [shape: bf16[32,288], index: 1, kind: input, shape index: {}]
  %s2 = inlined_call_operand.vmem [shape: f32[32,1], index: 2, kind: input, shape index: {}]
  %s3 = inlined_call_operand.vmem [shape: bf16[32,288], index: 3, kind: input, shape index: {}]
  %s4 = inlined_call_operand.vmem [shape: f32[32,1], index: 4, kind: input, shape index: {}]
  %s5 = inlined_call_operand.vmem [shape: f32[2,32,384], index: 5, kind: output, shape index: {}]
  %s6 = sld [smem:[#allocation0]]
  $region53: #{resblock_forward.1} parent=0
    _
  %s8 = ssub.s32 1, %s6
  %s9 = scalar_select 0, %s8, %s6
  loop: start=0, step=1, limit=4
  $region2: #{resblock_forward.1} parent=0 // loop_pre_header
    _
  $region3: #{resblock_forward.1} parent=0 // loop_header
    %s11 = sphi 0, %s15
    %p12 = scmp.ge.s32.totalorder %s11, 4
    %s21 = sphi 0, %s23
    %s24 = sphi 0, %s21
    %s25 = sphi 0, %s24
    %s41 = sphi 0, %s25
    %s45 = sphi 0, %s45
    %s47 = sphi 0, %s45
    %s48 = sphi 0, %s47
    %s62 = sphi 0, %s48
    %s66 = sphi 0, %s66
    %s68 = sphi 0, %s66
    %s69 = sphi 0, %s68
    %s83 = sphi 0, %s69
    %s87 = sphi 0, %s87
    %s89 = sphi 0, %s87
    %s90 = sphi 0, %s89
    %s104 = sphi 0, %s90
    %s108 = sphi 0, %s108
    %s110 = sphi 0, %s108
    %s111 = sphi 0, %s110
    %s125 = sphi 0, %s111
    %s131 = sphi 0, %s133
    %s134 = sphi 0, %s131
    %s135 = sphi 0, %s134
    %s151 = sphi 0, %s135
  $region4: #{resblock_forward.1} parent=0 // loop_header_branch
    %14 = sbr.rel (%p12) target = $region8
  $region5: #{resblock_forward.1} parent=0 // loop_body
    %s16 = ssub.s32 %s11, 1
    %s17 = ssub.s32 %s11, 2
    %s18 = sadd.s32 %s11, 1
    %s19 = ssub.s32 %s11, %s18
    %p20 = scmp.eq.s32.totalorder %s19, 0
    %s22 = sadd.s32 %s21, 1
    %s23 = scalar_select %p20, %s21, %s22
    %p26 = pneg %p20
    %p27 = scmp.eq.s32.totalorder %s11, 1
    %p28 = por %p26, %p27
    %p29 = scmp.ne.s32.totalorder %s21, %s24
    %p30 = scmp.eq.s32.totalorder %s11, 0
    %p31 = por %p29, %p30
    %p32 = scmp.ne.s32.totalorder %s21, %s24
    %p33 = scmp.eq.s32.totalorder %s16, 1
    %p34 = por %p32, %p33
    %p35 = scmp.ne.s32.totalorder %s24, %s25
    %p36 = scmp.eq.s32.totalorder %s16, 0
    %p37 = por %p35, %p36
    %p38 = scmp.ne.s32.totalorder %s24, %s25
    %p39 = scmp.eq.s32.totalorder %s17, 1
    %p40 = por %p38, %p39
    %p42 = scmp.ne.s32.totalorder %s25, %s41
    %p43 = scmp.eq.s32.totalorder %s17, 0
    %p44 = por %p42, %p43
    %s46 = sadd.s32 %s45, 1
    %p49 = scmp.eq.s32.totalorder %s11, 1
    %p50 = scmp.ne.s32.totalorder %s45, %s47
    %p51 = scmp.eq.s32.totalorder %s11, 0
    %p52 = por %p50, %p51
    %p53 = scmp.ne.s32.totalorder %s45, %s47
    %p54 = scmp.eq.s32.totalorder %s16, 1
    %p55 = por %p53, %p54
    %p56 = scmp.ne.s32.totalorder %s47, %s48
    %p57 = scmp.eq.s32.totalorder %s16, 0
    %p58 = por %p56, %p57
    %p59 = scmp.ne.s32.totalorder %s47, %s48
    %p60 = scmp.eq.s32.totalorder %s17, 1
    %p61 = por %p59, %p60
    %p63 = scmp.ne.s32.totalorder %s48, %s62
    %p64 = scmp.eq.s32.totalorder %s17, 0
    %p65 = por %p63, %p64
    %s67 = sadd.s32 %s66, 1
    %p70 = scmp.eq.s32.totalorder %s11, 1
    %p71 = scmp.ne.s32.totalorder %s66, %s68
    %p72 = scmp.eq.s32.totalorder %s11, 0
    %p73 = por %p71, %p72
    %p74 = scmp.ne.s32.totalorder %s66, %s68
    %p75 = scmp.eq.s32.totalorder %s16, 1
    %p76 = por %p74, %p75
    %p77 = scmp.ne.s32.totalorder %s68, %s69
    %p78 = scmp.eq.s32.totalorder %s16, 0
    %p79 = por %p77, %p78
    %p80 = scmp.ne.s32.totalorder %s68, %s69
    %p81 = scmp.eq.s32.totalorder %s17, 1
    %p82 = por %p80, %p81
    %p84 = scmp.ne.s32.totalorder %s69, %s83
    %p85 = scmp.eq.s32.totalorder %s17, 0
    %p86 = por %p84, %p85
    %s88 = sadd.s32 %s87, 1
    %p91 = scmp.eq.s32.totalorder %s11, 1
    %p92 = scmp.ne.s32.totalorder %s87, %s89
    %p93 = scmp.eq.s32.totalorder %s11, 0
    %p94 = por %p92, %p93
    %p95 = scmp.ne.s32.totalorder %s87, %s89
    %p96 = scmp.eq.s32.totalorder %s16, 1
    %p97 = por %p95, %p96
    %p98 = scmp.ne.s32.totalorder %s89, %s90
    %p99 = scmp.eq.s32.totalorder %s16, 0
    %p100 = por %p98, %p99
    %p101 = scmp.ne.s32.totalorder %s89, %s90
    %p102 = scmp.eq.s32.totalorder %s17, 1
    %p103 = por %p101, %p102
    %p105 = scmp.ne.s32.totalorder %s90, %s104
    %p106 = scmp.eq.s32.totalorder %s17, 0
    %p107 = por %p105, %p106
    %s109 = sadd.s32 %s108, 1
    %p112 = scmp.eq.s32.totalorder %s11, 1
    %p113 = scmp.ne.s32.totalorder %s108, %s110
    %p114 = scmp.eq.s32.totalorder %s11, 0
    %p115 = por %p113, %p114
    %p116 = scmp.ne.s32.totalorder %s108, %s110
    %p117 = scmp.eq.s32.totalorder %s16, 1
    %p118 = por %p116, %p117
    %p119 = scmp.ne.s32.totalorder %s110, %s111
    %p120 = scmp.eq.s32.totalorder %s16, 0
    %p121 = por %p119, %p120
    %p122 = scmp.ne.s32.totalorder %s110, %s111
    %p123 = scmp.eq.s32.totalorder %s17, 1
    %p124 = por %p122, %p123
    %p126 = scmp.ne.s32.totalorder %s111, %s125
    %p127 = scmp.eq.s32.totalorder %s17, 0
    %p128 = por %p126, %p127
    %s129 = ssub.s32 %s11, %s18
    %p130 = scmp.eq.s32.totalorder %s129, 0
    %s132 = sadd.s32 %s131, 1
    %s133 = scalar_select %p130, %s131, %s132
    %p136 = pneg %p130
    %p137 = scmp.eq.s32.totalorder %s11, 1
    %p138 = por %p136, %p137
    %p139 = scmp.ne.s32.totalorder %s131, %s134
    %p140 = scmp.eq.s32.totalorder %s11, 0
    %p141 = por %p139, %p140
    %p142 = scmp.ne.s32.totalorder %s131, %s134
    %p143 = scmp.eq.s32.totalorder %s16, 1
    %p144 = por %p142, %p143
    %p145 = scmp.ne.s32.totalorder %s134, %s135
    %p146 = scmp.eq.s32.totalorder %s16, 0
    %p147 = por %p145, %p146
    %p148 = scmp.ne.s32.totalorder %s134, %s135
    %p149 = scmp.eq.s32.totalorder %s17, 1
    %p150 = por %p148, %p149
    %p152 = scmp.ne.s32.totalorder %s135, %s151
    %p153 = scmp.eq.s32.totalorder %s17, 0
    %p154 = por %p152, %p153
    %p155 = scmp.le.s32.totalorder 1, %s11
    %p156 = scmp.lt.s32.totalorder %s11, 3
    %p157 = pnand %p155, %p156
    %p158 = pneg %p157
    // Predicated region
    $region9: #{resblock_forward.1} parent=5 // pred_check
      _
    $region10: #{resblock_forward.1} parent=5 // pred_check_branch
      %160 = sbr.rel (%p157) target = $region12
    $region11: #{resblock_forward.1} parent=5 // pred_region
      %s161 = ssub.s32 %s11, 1
      // Predicated region
      $region13: #{resblock_forward.1} parent=11 // pred_check
        %p162 = pneg %p58
      $region14: #{resblock_forward.1} parent=11 // pred_check_branch
        %164 = sbr.rel (%p162) target = $region16
      $region15: #{resblock_forward.1} parent=11 // pred_region
        _
      $region16: #{resblock_forward.1} parent=11 // pred_fallthru
        _
      // Predicated region
      $region17: #{resblock_forward.1} parent=11 // pred_check
        %p165 = pneg %p79
      $region18: #{resblock_forward.1} parent=11 // pred_check_branch
        %167 = sbr.rel (%p165) target = $region20
      $region19: #{resblock_forward.1} parent=11 // pred_region
        _
      $region20: #{resblock_forward.1} parent=11 // pred_fallthru
        _
      // Predicated region
      $region21: #{resblock_forward.1} parent=11 // pred_check
        %p168 = pneg %p100
      $region22: #{resblock_forward.1} parent=11 // pred_check_branch
        %170 = sbr.rel (%p168) target = $region24
      $region23: #{resblock_forward.1} parent=11 // pred_region
        _
      $region24: #{resblock_forward.1} parent=11 // pred_fallthru
        _
      // Predicated region
      $region25: #{resblock_forward.1} parent=11 // pred_check
        %p171 = pneg %p121
      $region26: #{resblock_forward.1} parent=11 // pred_check_branch
        %173 = sbr.rel (%p171) target = $region28
      $region27: #{resblock_forward.1} parent=11 // pred_region
        _
      $region28: #{resblock_forward.1} parent=11 // pred_fallthru
        _
    $region12: #{resblock_forward.1} parent=5 // pred_fallthru
      _
    %p174 = scmp.lt.s32.totalorder %s11, 2
    // Predicated region
    $region29: #{resblock_forward.1} parent=5 // pred_check
      %p175 = pneg %p174
    $region30: #{resblock_forward.1} parent=5 // pred_check_branch
      %177 = sbr.rel (%p175) target = $region32
    $region31: #{resblock_forward.1} parent=5 // pred_region
      // Predicated region
      $region33: #{resblock_forward.1} parent=31 // pred_check
        %p178 = pneg %p31
      $region34: #{resblock_forward.1} parent=31 // pred_check_branch
        %180 = sbr.rel (%p178) target = $region36
      $region35: #{resblock_forward.1} parent=31 // pred_region
        %p181 = scmp.lt.s32.totalorder %s11, 1
        %s182 = scalar_select %p181, %s11, 1
        %s183 = smul.addr %s182, 16
        %s184 = smul.addr %s183, 8
        %s185 = scalar_lea.vmem %s0, %s184
      $region36: #{resblock_forward.1} parent=31 // pred_fallthru
        _
    $region32: #{resblock_forward.1} parent=5 // pred_fallthru
      _
    %p186 = scmp.le.s32.totalorder 1, %s11
    %p187 = scmp.lt.s32.totalorder %s11, 3
    %p188 = pnand %p186, %p187
    %p189 = pneg %p188
    // Predicated region
    $region37: #{resblock_forward.1} parent=5 // pred_check
      _
    $region38: #{resblock_forward.1} parent=5 // pred_check_branch
      %191 = sbr.rel (%p188) target = $region40
    $region39: #{resblock_forward.1} parent=5 // pred_region
      %s192 = ssub.s32 %s11, 1
      %p193 = scmp.lt.s32.totalorder %s16, 1
      %s194 = scalar_select %p193, %s16, 1
      %s195 = smul.addr %s194, 16
      %s196 = smul.addr %s195, 8
      %s197 = scalar_lea.vmem %s0, %s196
      %p198 = pneg %p37
      %p199 = pneg %p34
      %p200 = pneg %p58
      %p201 = pneg %p55
      %p202 = pneg %p79
      %p203 = pneg %p76
      %p204 = pneg %p100
      %p205 = pneg %p97
      %p206 = pneg %p121
      %p207 = pneg %p118
      %p208 = pneg %p147
      %p209 = pneg %p144
      %p210 = scmp.lt.s32.totalorder %s16, 1
      %s211 = scalar_select %p210, %s16, 1
      %s212 = smul.addr %s211, 12
      %s213 = smul.addr %s212, 8
      %s214 = scalar_lea.vmem %s5, %s213
      %p215 = scmp.lt.s32.totalorder %s16, 1
      %s216 = scalar_select %p215, %s16, 1
      %s217 = smul.addr %s216, 16
      %s218 = smul.addr %s217, 8
      %s219 = scalar_lea.vmem %s0, %s218
      %p220 = scmp.lt.s32.totalorder %s16, 1
      %s221 = scalar_select %p220, %s16, 1
      %s222 = smul.addr %s221, 12
      %s223 = smul.addr %s222, 8
      %s224 = scalar_lea.vmem %s5, %s223
      %v226 = vld [vmem:[%s219] sm:$0xff]
      %v227 = vld [vmem:[%s219 + $0x8] sm:$0xff]
      %v228 = vld [vmem:[%s219 + $0x10] sm:$0xff]
      %v229 = vld [vmem:[%s219 + $0x18] sm:$0xff]
      %v230 = vld [vmem:[%s219 + $0x20] sm:$0xff]
      %v231 = vld [vmem:[%s219 + $0x28] sm:$0xff]
      %v232 = vld [vmem:[%s219 + $0x30] sm:$0xff]
      %v233 = vld [vmem:[%s219 + $0x38] sm:$0xff]
      %v234 = vld [vmem:[%s219 + $0x40] sm:$0xff]
      %v235 = vld [vmem:[%s219 + $0x48] sm:$0xff]
      %v236 = vld [vmem:[%s219 + $0x50] sm:$0xff]
      %v237 = vld [vmem:[%s219 + $0x58] sm:$0xff]
      %v238 = vld [vmem:[%s219 + $0x60] sm:$0xff]
      %v239 = vld [vmem:[%s219 + $0x68] sm:$0xff]
      %v240 = vld [vmem:[%s219 + $0x70] sm:$0xff]
      %v241 = vld [vmem:[%s219 + $0x78] sm:$0xff]
      %v242 = vpack.c.bf16 %v227, %v226
      %v243 = vpack.c.bf16 %v229, %v228
      %v244 = vpack.c.bf16 %v231, %v230
      %v245 = vpack.c.bf16 %v233, %v232
      %v246 = vpack.c.bf16 %v235, %v234
      %v247 = vpack.c.bf16 %v237, %v236
      %v248 = vpack.c.bf16 %v239, %v238
      %v249 = vpack.c.bf16 %v241, %v240
      %250 = vst [vmem:[#allocation2] sm:$0xff] %v242
      %251 = vst [vmem:[#allocation2 + $0x8] sm:$0xff] %v243
      %252 = vst [vmem:[#allocation2 + $0x10] sm:$0xff] %v244
      %253 = vst [vmem:[#allocation2 + $0x18] sm:$0xff] %v245
      %254 = vst [vmem:[#allocation2 + $0x20] sm:$0xff] %v246
      %255 = vst [vmem:[#allocation2 + $0x28] sm:$0xff] %v247
      %256 = vst [vmem:[#allocation2 + $0x30] sm:$0xff] %v248
      %257 = vst [vmem:[#allocation2 + $0x38] sm:$0xff] %v249
      %v258 = vld [vmem:[#allocation2] sm:$0xff]
      %v259 = vld [vmem:[#allocation2 + $0x8] sm:$0xf]
      %v260 = vld [vmem:[#allocation2 + $0x10] sm:$0xff]
      %v261 = vld [vmem:[#allocation2 + $0x18] sm:$0xf]
      %v262 = vld [vmem:[#allocation2 + $0x20] sm:$0xff]
      %v263 = vld [vmem:[#allocation2 + $0x28] sm:$0xf]
      %v264 = vld [vmem:[#allocation2 + $0x30] sm:$0xff]
      %v265 = vld [vmem:[#allocation2 + $0x38] sm:$0xf]
      %266 = vst [vmem:[#allocation4] sm:$0xff] %v258
      %267 = vst [vmem:[#allocation4 + $0x8] sm:$0xf] %v259
      %268 = vst [vmem:[#allocation4 + $0xc] sm:$0xff] %v260
      %269 = vst [vmem:[#allocation4 + $0x14] sm:$0xf] %v261
      %270 = vst [vmem:[#allocation4 + $0x18] sm:$0xff] %v262
      %271 = vst [vmem:[#allocation4 + $0x20] sm:$0xf] %v263
      %272 = vst [vmem:[#allocation4 + $0x24] sm:$0xff] %v264
      %273 = vst [vmem:[#allocation4 + $0x2c] sm:$0xf] %v265
      %v274 = vld [vmem:[#allocation2] sm:$0xff]
      %v275 = vld [vmem:[#allocation2 + $0x8] sm:$0xff]
      %v276 = vld [vmem:[#allocation2 + $0x10] sm:$0xff]
      %v277 = vld [vmem:[#allocation2 + $0x18] sm:$0xff]
      %v278 = vld [vmem:[#allocation2 + $0x20] sm:$0xff]
      %v279 = vld [vmem:[#allocation2 + $0x28] sm:$0xff]
      %v280 = vld [vmem:[#allocation2 + $0x30] sm:$0xff]
      %v281 = vld [vmem:[#allocation2 + $0x38] sm:$0xff]
      %290 = vrot.lane.b32.xlu0 %v274, 127
      %v291 = vpop.permute.xlu0 %290
      %292 = vrot.lane.b32.xlu0 %v275, 127
      %v293 = vpop.permute.xlu0 %292
      %294 = vrot.lane.b32.xlu0 %v276, 127
      %v295 = vpop.permute.xlu0 %294
      %296 = vrot.lane.b32.xlu0 %v277, 127
      %v297 = vpop.permute.xlu0 %296
      %298 = vrot.lane.b32.xlu0 %v278, 127
      %v299 = vpop.permute.xlu0 %298
      %300 = vrot.lane.b32.xlu0 %v279, 127
      %v301 = vpop.permute.xlu0 %300
      %302 = vrot.lane.b32.xlu0 %v280, 127
      %v303 = vpop.permute.xlu0 %302
      %304 = vrot.lane.b32.xlu0 %v281, 127
      %v305 = vpop.permute.xlu0 %304
      %v306 = vrot.slane %v291, 4
      %v307 = vrot.slane %v293, 4
      %v308 = vrot.slane %v295, 4
      %v309 = vrot.slane %v297, 4
      %v310 = vrot.slane %v299, 4
      %v311 = vrot.slane %v301, 4
      %v312 = vrot.slane %v303, 4
      %v313 = vrot.slane %v305, 4
      %vm314 = vcmask 1043456
      %v315 = vsel %vm314, %v306, %v307
      %vm316 = vcmask 1039360
      %v317 = vsel %vm316, %v291, %v315
      %v318 = vsel %vm316, %v293, %v307
      %v319 = vsel %vm314, %v308, %v309
      %v320 = vsel %vm316, %v295, %v319
      %v321 = vsel %vm316, %v297, %v309
      %v322 = vsel %vm314, %v310, %v311
      %v323 = vsel %vm316, %v299, %v322
      %v324 = vsel %vm316, %v301, %v311
      %v325 = vsel %vm314, %v312, %v313
      %v326 = vsel %vm316, %v303, %v325
      %v327 = vsel %vm316, %v305, %v313
      %336 = vst [vmem:[#allocation4 + $0x30] sm:$0xff] %v317
      %337 = vst [vmem:[#allocation4 + $0x38] sm:$0xf] %v318
      %338 = vst [vmem:[#allocation4 + $0x3c] sm:$0xff] %v320
      %339 = vst [vmem:[#allocation4 + $0x44] sm:$0xf] %v321
      %340 = vst [vmem:[#allocation4 + $0x48] sm:$0xff] %v323
      %341 = vst [vmem:[#allocation4 + $0x50] sm:$0xf] %v324
      %342 = vst [vmem:[#allocation4 + $0x54] sm:$0xff] %v326
      %343 = vst [vmem:[#allocation4 + $0x5c] sm:$0xf] %v327
      %v344 = vld [vmem:[#allocation2] sm:$0xff]
      %v345 = vld [vmem:[#allocation2 + $0x8] sm:$0xff]
      %v346 = vld [vmem:[#allocation2 + $0x10] sm:$0xff]
      %v347 = vld [vmem:[#allocation2 + $0x18] sm:$0xff]
      %v348 = vld [vmem:[#allocation2 + $0x20] sm:$0xff]
      %v349 = vld [vmem:[#allocation2 + $0x28] sm:$0xff]
      %v350 = vld [vmem:[#allocation2 + $0x30] sm:$0xff]
      %v351 = vld [vmem:[#allocation2 + $0x38] sm:$0xff]
      %360 = vrot.lane.b32.xlu0 %v344, 126
      %v361 = vpop.permute.xlu0 %360
      %362 = vrot.lane.b32.xlu0 %v345, 126
      %v363 = vpop.permute.xlu0 %362
      %364 = vrot.lane.b32.xlu0 %v346, 126
      %v365 = vpop.permute.xlu0 %364
      %366 = vrot.lane.b32.xlu0 %v347, 126
      %v367 = vpop.permute.xlu0 %366
      %368 = vrot.lane.b32.xlu0 %v348, 126
      %v369 = vpop.permute.xlu0 %368
      %370 = vrot.lane.b32.xlu0 %v349, 126
      %v371 = vpop.permute.xlu0 %370
      %372 = vrot.lane.b32.xlu0 %v350, 126
      %v373 = vpop.permute.xlu0 %372
      %374 = vrot.lane.b32.xlu0 %v351, 126
      %v375 = vpop.permute.xlu0 %374
      %v376 = vrot.slane %v361, 4
      %v377 = vrot.slane %v363, 4
      %v378 = vrot.slane %v365, 4
      %v379 = vrot.slane %v367, 4
      %v380 = vrot.slane %v369, 4
      %v381 = vrot.slane %v371, 4
      %v382 = vrot.slane %v373, 4
      %v383 = vrot.slane %v375, 4
      %v384 = vsel %vm314, %v376, %v377
      %vm385 = vcmask 1031168
      %v386 = vsel %vm385, %v361, %v384
      %v387 = vsel %vm385, %v363, %v377
      %v388 = vsel %vm314, %v378, %v379
      %v389 = vsel %vm385, %v365, %v388
      %v390 = vsel %vm385, %v367, %v379
      %v391 = vsel %vm314, %v380, %v381
      %v392 = vsel %vm385, %v369, %v391
      %v393 = vsel %vm385, %v371, %v381
      %v394 = vsel %vm314, %v382, %v383
      %v395 = vsel %vm385, %v373, %v394
      %v396 = vsel %vm385, %v375, %v383
      %405 = vst [vmem:[#allocation4 + $0x60] sm:$0xff] %v386
      %406 = vst [vmem:[#allocation4 + $0x68] sm:$0xf] %v387
      %407 = vst [vmem:[#allocation4 + $0x6c] sm:$0xff] %v389
      %408 = vst [vmem:[#allocation4 + $0x74] sm:$0xf] %v390
      %409 = vst [vmem:[#allocation4 + $0x78] sm:$0xff] %v392
      %410 = vst [vmem:[#allocation4 + $0x80] sm:$0xf] %v393
      %411 = vst [vmem:[#allocation4 + $0x84] sm:$0xff] %v395
      %412 = vst [vmem:[#allocation4 + $0x8c] sm:$0xf] %v396
      %v413 = vld [vmem:[#allocation2] sm:$0xff]
      %v414 = vld [vmem:[#allocation2 + $0x8] sm:$0xff]
      %v415 = vld [vmem:[#allocation2 + $0x10] sm:$0xff]
      %v416 = vld [vmem:[#allocation2 + $0x18] sm:$0xff]
      %v417 = vld [vmem:[#allocation2 + $0x20] sm:$0xff]
      %v418 = vld [vmem:[#allocation2 + $0x28] sm:$0xff]
      %v419 = vld [vmem:[#allocation2 + $0x30] sm:$0xff]
      %v420 = vld [vmem:[#allocation2 + $0x38] sm:$0xff]
      %429 = vrot.lane.b32.xlu0 %v413, 110
      %v430 = vpop.permute.xlu0 %429
      %431 = vrot.lane.b32.xlu0 %v414, 110
      %v432 = vpop.permute.xlu0 %431
      %433 = vrot.lane.b32.xlu0 %v415, 110
      %v434 = vpop.permute.xlu0 %433
      %435 = vrot.lane.b32.xlu0 %v416, 110
      %v436 = vpop.permute.xlu0 %435
      %437 = vrot.lane.b32.xlu0 %v417, 110
      %v438 = vpop.permute.xlu0 %437
      %439 = vrot.lane.b32.xlu0 %v418, 110
      %v440 = vpop.permute.xlu0 %439
      %441 = vrot.lane.b32.xlu0 %v419, 110
      %v442 = vpop.permute.xlu0 %441
      %443 = vrot.lane.b32.xlu0 %v420, 110
      %v444 = vpop.permute.xlu0 %443
      %v445 = vrot.slane %v430, 4
      %v446 = vrot.slane %v432, 4
      %v447 = vrot.slane %v434, 4
      %v448 = vrot.slane %v436, 4
      %v449 = vrot.slane %v438, 4
      %v450 = vrot.slane %v440, 4
      %v451 = vrot.slane %v442, 4
      %v452 = vrot.slane %v444, 4
      %v453 = vsel %vm314, %v445, %v446
      %vm454 = vcmask 900096
      %v455 = vsel %vm454, %v430, %v453
      %v456 = vsel %vm454, %v432, %v446
      %v457 = vsel %vm314, %v447, %v448
      %v458 = vsel %vm454, %v434, %v457
      %v459 = vsel %vm454, %v436, %v448
      %v460 = vsel %vm314, %v449, %v450
      %v461 = vsel %vm454, %v438, %v460
      %v462 = vsel %vm454, %v440, %v450
      %v463 = vsel %vm314, %v451, %v452
      %v464 = vsel %vm454, %v442, %v463
      %v465 = vsel %vm454, %v444, %v452
      %474 = vst [vmem:[#allocation4 + $0x90] sm:$0xff] %v455
      %475 = vst [vmem:[#allocation4 + $0x98] sm:$0xf] %v456
      %476 = vst [vmem:[#allocation4 + $0x9c] sm:$0xff] %v458
      %477 = vst [vmem:[#allocation4 + $0xa4] sm:$0xf] %v459
      %478 = vst [vmem:[#allocation4 + $0xa8] sm:$0xff] %v461
      %479 = vst [vmem:[#allocation4 + $0xb0] sm:$0xf] %v462
      %480 = vst [vmem:[#allocation4 + $0xb4] sm:$0xff] %v464
      %481 = vst [vmem:[#allocation4 + $0xbc] sm:$0xf] %v465
      %v482 = vld [vmem:[#allocation2] sm:$0xff]
      %v483 = vld [vmem:[#allocation2 + $0x8] sm:$0xff]
      %v484 = vld [vmem:[#allocation2 + $0x10] sm:$0xff]
      %v485 = vld [vmem:[#allocation2 + $0x18] sm:$0xff]
      %v486 = vld [vmem:[#allocation2 + $0x20] sm:$0xff]
      %v487 = vld [vmem:[#allocation2 + $0x28] sm:$0xff]
      %v488 = vld [vmem:[#allocation2 + $0x30] sm:$0xff]
      %v489 = vld [vmem:[#allocation2 + $0x38] sm:$0xff]
      %498 = vrot.lane.b32.xlu0 %v482, 109
      %v499 = vpop.permute.xlu0 %498
      %500 = vrot.lane.b32.xlu0 %v483, 109
      %v501 = vpop.permute.xlu0 %500
      %502 = vrot.lane.b32.xlu0 %v484, 109
      %v503 = vpop.permute.xlu0 %502
      %504 = vrot.lane.b32.xlu0 %v485, 109
      %v505 = vpop.permute.xlu0 %504
      %506 = vrot.lane.b32.xlu0 %v486, 109
      %v507 = vpop.permute.xlu0 %506
      %508 = vrot.lane.b32.xlu0 %v487, 109
      %v509 = vpop.permute.xlu0 %508
      %510 = vrot.lane.b32.xlu0 %v488, 109
      %v511 = vpop.permute.xlu0 %510
      %512 = vrot.lane.b32.xlu0 %v489, 109
      %v513 = vpop.permute.xlu0 %512
      %v514 = vrot.slane %v499, 4
      %v515 = vrot.slane %v501, 4
      %v516 = vrot.slane %v503, 4
      %v517 = vrot.slane %v505, 4
      %v518 = vrot.slane %v507, 4
      %v519 = vrot.slane %v509, 4
      %v520 = vrot.slane %v511, 4
      %v521 = vrot.slane %v513, 4
      %v522 = vsel %vm314, %v514, %v515
      %vm523 = vcmask 891904
      %v524 = vsel %vm523, %v499, %v522
      %v525 = vsel %vm523, %v501, %v515
      %v526 = vsel %vm314, %v516, %v517
      %v527 = vsel %vm523, %v503, %v526
      %v528 = vsel %vm523, %v505, %v517
      %v529 = vsel %vm314, %v518, %v519
      %v530 = vsel %vm523, %v507, %v529
      %v531 = vsel %vm523, %v509, %v519
      %v532 = vsel %vm314, %v520, %v521
      %v533 = vsel %vm523, %v511, %v532
      %v534 = vsel %vm523, %v513, %v521
      %543 = vst [vmem:[#allocation4 + $0xc0] sm:$0xff] %v524
      %544 = vst [vmem:[#allocation4 + $0xc8] sm:$0xf] %v525
      %545 = vst [vmem:[#allocation4 + $0xcc] sm:$0xff] %v527
      %546 = vst [vmem:[#allocation4 + $0xd4] sm:$0xf] %v528
      %547 = vst [vmem:[#allocation4 + $0xd8] sm:$0xff] %v530
      %548 = vst [vmem:[#allocation4 + $0xe0] sm:$0xf] %v531
      %549 = vst [vmem:[#allocation4 + $0xe4] sm:$0xff] %v533
      %550 = vst [vmem:[#allocation4 + $0xec] sm:$0xf] %v534
      %v551 = vld [vmem:[#allocation2] sm:$0xff]
      %v552 = vld [vmem:[#allocation2 + $0x8] sm:$0xff]
      %v553 = vld [vmem:[#allocation2 + $0x10] sm:$0xff]
      %v554 = vld [vmem:[#allocation2 + $0x18] sm:$0xff]
      %v555 = vld [vmem:[#allocation2 + $0x20] sm:$0xff]
      %v556 = vld [vmem:[#allocation2 + $0x28] sm:$0xff]
      %v557 = vld [vmem:[#allocation2 + $0x30] sm:$0xff]
      %v558 = vld [vmem:[#allocation2 + $0x38] sm:$0xff]
      %567 = vrot.lane.b32.xlu0 %v551, 108
      %v568 = vpop.permute.xlu0 %567
      %569 = vrot.lane.b32.xlu0 %v552, 108
      %v570 = vpop.permute.xlu0 %569
      %571 = vrot.lane.b32.xlu0 %v553, 108
      %v572 = vpop.permute.xlu0 %571
      %573 = vrot.lane.b32.xlu0 %v554, 108
      %v574 = vpop.permute.xlu0 %573
      %575 = vrot.lane.b32.xlu0 %v555, 108
      %v576 = vpop.permute.xlu0 %575
      %577 = vrot.lane.b32.xlu0 %v556, 108
      %v578 = vpop.permute.xlu0 %577
      %579 = vrot.lane.b32.xlu0 %v557, 108
      %v580 = vpop.permute.xlu0 %579
      %581 = vrot.lane.b32.xlu0 %v558, 108
      %v582 = vpop.permute.xlu0 %581
      %v583 = vrot.slane %v568, 4
      %v584 = vrot.slane %v570, 4
      %v585 = vrot.slane %v572, 4
      %v586 = vrot.slane %v574, 4
      %v587 = vrot.slane %v576, 4
      %v588 = vrot.slane %v578, 4
      %v589 = vrot.slane %v580, 4
      %v590 = vrot.slane %v582, 4
      %v591 = vsel %vm314, %v583, %v584
      %vm592 = vcmask 883712
      %v593 = vsel %vm592, %v568, %v591
      %v594 = vsel %vm592, %v570, %v584
      %v595 = vsel %vm314, %v585, %v586
      %v596 = vsel %vm592, %v572, %v595
      %v597 = vsel %vm592, %v574, %v586
      %v598 = vsel %vm314, %v587, %v588
      %v599 = vsel %vm592, %v576, %v598
      %v600 = vsel %vm592, %v578, %v588
      %v601 = vsel %vm314, %v589, %v590
      %v602 = vsel %vm592, %v580, %v601
      %v603 = vsel %vm592, %v582, %v590
      %612 = vst [vmem:[#allocation4 + $0xf0] sm:$0xff] %v593
      %613 = vst [vmem:[#allocation4 + $0xf8] sm:$0xf] %v594
      %614 = vst [vmem:[#allocation4 + $0xfc] sm:$0xff] %v596
      %615 = vst [vmem:[#allocation4 + $0x104] sm:$0xf] %v597
      %616 = vst [vmem:[#allocation4 + $0x108] sm:$0xff] %v599
      %617 = vst [vmem:[#allocation4 + $0x110] sm:$0xf] %v600
      %618 = vst [vmem:[#allocation4 + $0x114] sm:$0xff] %v602
      %619 = vst [vmem:[#allocation4 + $0x11c] sm:$0xf] %v603
      %v620 = vld [vmem:[#allocation2] sm:$0xff]
      %v621 = vld [vmem:[#allocation2 + $0x8] sm:$0xff]
      %v622 = vld [vmem:[#allocation2 + $0x10] sm:$0xff]
      %v623 = vld [vmem:[#allocation2 + $0x18] sm:$0xff]
      %v624 = vld [vmem:[#allocation2 + $0x20] sm:$0xff]
      %v625 = vld [vmem:[#allocation2 + $0x28] sm:$0xff]
      %v626 = vld [vmem:[#allocation2 + $0x30] sm:$0xff]
      %v627 = vld [vmem:[#allocation2 + $0x38] sm:$0xff]
      %636 = vrot.lane.b32.xlu0 %v620, 92
      %v637 = vpop.permute.xlu0 %636
      %638 = vrot.lane.b32.xlu0 %v621, 92
      %v639 = vpop.permute.xlu0 %638
      %640 = vrot.lane.b32.xlu0 %v622, 92
      %v641 = vpop.permute.xlu0 %640
      %642 = vrot.lane.b32.xlu0 %v623, 92
      %v643 = vpop.permute.xlu0 %642
      %644 = vrot.lane.b32.xlu0 %v624, 92
      %v645 = vpop.permute.xlu0 %644
      %646 = vrot.lane.b32.xlu0 %v625, 92
      %v647 = vpop.permute.xlu0 %646
      %648 = vrot.lane.b32.xlu0 %v626, 92
      %v649 = vpop.permute.xlu0 %648
      %650 = vrot.lane.b32.xlu0 %v627, 92
      %v651 = vpop.permute.xlu0 %650
      %v652 = vrot.slane %v637, 4
      %v653 = vrot.slane %v639, 4
      %v654 = vrot.slane %v641, 4
      %v655 = vrot.slane %v643, 4
      %v656 = vrot.slane %v645, 4
      %v657 = vrot.slane %v647, 4
      %v658 = vrot.slane %v649, 4
      %v659 = vrot.slane %v651, 4
      %v660 = vsel %vm314, %v652, %v653
      %vm661 = vcmask 752640
      %v662 = vsel %vm661, %v637, %v660
      %v663 = vsel %vm661, %v639, %v653
      %v664 = vsel %vm314, %v654, %v655
      %v665 = vsel %vm661, %v641, %v664
      %v666 = vsel %vm661, %v643, %v655
      %v667 = vsel %vm314, %v656, %v657
      %v668 = vsel %vm661, %v645, %v667
      %v669 = vsel %vm661, %v647, %v657
      %v670 = vsel %vm314, %v658, %v659
      %v671 = vsel %vm661, %v649, %v670
      %v672 = vsel %vm661, %v651, %v659
      %681 = vst [vmem:[#allocation4 + $0x120] sm:$0xff] %v662
      %682 = vst [vmem:[#allocation4 + $0x128] sm:$0xf] %v663
      %683 = vst [vmem:[#allocation4 + $0x12c] sm:$0xff] %v665
      %684 = vst [vmem:[#allocation4 + $0x134] sm:$0xf] %v666
      %685 = vst [vmem:[#allocation4 + $0x138] sm:$0xff] %v668
      %686 = vst [vmem:[#allocation4 + $0x140] sm:$0xf] %v669
      %687 = vst [vmem:[#allocation4 + $0x144] sm:$0xff] %v671
      %688 = vst [vmem:[#allocation4 + $0x14c] sm:$0xf] %v672
      %v689 = vld [vmem:[#allocation2] sm:$0xff]
      %v690 = vld [vmem:[#allocation2 + $0x8] sm:$0xff]
      %v691 = vld [vmem:[#allocation2 + $0x10] sm:$0xff]
      %v692 = vld [vmem:[#allocation2 + $0x18] sm:$0xff]
      %v693 = vld [vmem:[#allocation2 + $0x20] sm:$0xff]
      %v694 = vld [vmem:[#allocation2 + $0x28] sm:$0xff]
      %v695 = vld [vmem:[#allocation2 + $0x30] sm:$0xff]
      %v696 = vld [vmem:[#allocation2 + $0x38] sm:$0xff]
      %705 = vrot.lane.b32.xlu0 %v689, 91
      %v706 = vpop.permute.xlu0 %705
      %707 = vrot.lane.b32.xlu0 %v690, 91
      %v708 = vpop.permute.xlu0 %707
      %709 = vrot.lane.b32.xlu0 %v691, 91
      %v710 = vpop.permute.xlu0 %709
      %711 = vrot.lane.b32.xlu0 %v692, 91
      %v712 = vpop.permute.xlu0 %711
      %713 = vrot.lane.b32.xlu0 %v693, 91
      %v714 = vpop.permute.xlu0 %713
      %715 = vrot.lane.b32.xlu0 %v694, 91
      %v716 = vpop.permute.xlu0 %715
      %717 = vrot.lane.b32.xlu0 %v695, 91
      %v718 = vpop.permute.xlu0 %717
      %719 = vrot.lane.b32.xlu0 %v696, 91
      %v720 = vpop.permute.xlu0 %719
      %v721 = vrot.slane %v706, 4
      %v722 = vrot.slane %v708, 4
      %v723 = vrot.slane %v710, 4
      %v724 = vrot.slane %v712, 4
      %v725 = vrot.slane %v714, 4
      %v726 = vrot.slane %v716, 4
      %v727 = vrot.slane %v718, 4
      %v728 = vrot.slane %v720, 4
      %v729 = vsel %vm314, %v721, %v722
      %vm730 = vcmask 744448
      %v731 = vsel %vm730, %v706, %v729
      %v732 = vsel %vm730, %v708, %v722
      %v733 = vsel %vm314, %v723, %v724
      %v734 = vsel %vm730, %v710, %v733
      %v735 = vsel %vm730, %v712, %v724
      %v736 = vsel %vm314, %v725, %v726
      %v737 = vsel %vm730, %v714, %v736
      %v738 = vsel %vm730, %v716, %v726
      %v739 = vsel %vm314, %v727, %v728
      %v740 = vsel %vm730, %v718, %v739
      %v741 = vsel %vm730, %v720, %v728
      %750 = vst [vmem:[#allocation4 + $0x150] sm:$0xff] %v731
      %751 = vst [vmem:[#allocation4 + $0x158] sm:$0xf] %v732
      %752 = vst [vmem:[#allocation4 + $0x15c] sm:$0xff] %v734
      %753 = vst [vmem:[#allocation4 + $0x164] sm:$0xf] %v735
      %754 = vst [vmem:[#allocation4 + $0x168] sm:$0xff] %v737
      %755 = vst [vmem:[#allocation4 + $0x170] sm:$0xf] %v738
      %756 = vst [vmem:[#allocation4 + $0x174] sm:$0xff] %v740
      %757 = vst [vmem:[#allocation4 + $0x17c] sm:$0xf] %v741
      %v758 = vld [vmem:[#allocation2] sm:$0xff]
      %v759 = vld [vmem:[#allocation2 + $0x8] sm:$0xff]
      %v760 = vld [vmem:[#allocation2 + $0x10] sm:$0xff]
      %v761 = vld [vmem:[#allocation2 + $0x18] sm:$0xff]
      %v762 = vld [vmem:[#allocation2 + $0x20] sm:$0xff]
      %v763 = vld [vmem:[#allocation2 + $0x28] sm:$0xff]
      %v764 = vld [vmem:[#allocation2 + $0x30] sm:$0xff]
      %v765 = vld [vmem:[#allocation2 + $0x38] sm:$0xff]
      %774 = vrot.lane.b32.xlu0 %v758, 90
      %v775 = vpop.permute.xlu0 %774
      %776 = vrot.lane.b32.xlu0 %v759, 90
      %v777 = vpop.permute.xlu0 %776
      %778 = vrot.lane.b32.xlu0 %v760, 90
      %v779 = vpop.permute.xlu0 %778
      %780 = vrot.lane.b32.xlu0 %v761, 90
      %v781 = vpop.permute.xlu0 %780
      %782 = vrot.lane.b32.xlu0 %v762, 90
      %v783 = vpop.permute.xlu0 %782
      %784 = vrot.lane.b32.xlu0 %v763, 90
      %v785 = vpop.permute.xlu0 %784
      %786 = vrot.lane.b32.xlu0 %v764, 90
      %v787 = vpop.permute.xlu0 %786
      %788 = vrot.lane.b32.xlu0 %v765, 90
      %v789 = vpop.permute.xlu0 %788
      %v790 = vrot.slane %v775, 4
      %v791 = vrot.slane %v777, 4
      %v792 = vrot.slane %v779, 4
      %v793 = vrot.slane %v781, 4
      %v794 = vrot.slane %v783, 4
      %v795 = vrot.slane %v785, 4
      %v796 = vrot.slane %v787, 4
      %v797 = vrot.slane %v789, 4
      %v798 = vsel %vm314, %v790, %v791
      %vm799 = vcmask 736256
      %v800 = vsel %vm799, %v775, %v798
      %v801 = vsel %vm799, %v777, %v791
      %v802 = vsel %vm314, %v792, %v793
      %v803 = vsel %vm799, %v779, %v802
      %v804 = vsel %vm799, %v781, %v793
      %v805 = vsel %vm314, %v794, %v795
      %v806 = vsel %vm799, %v783, %v805
      %v807 = vsel %vm799, %v785, %v795
      %v808 = vsel %vm314, %v796, %v797
      %v809 = vsel %vm799, %v787, %v808
      %v810 = vsel %vm799, %v789, %v797
      %819 = vst [vmem:[#allocation4 + $0x180] sm:$0xff] %v800
      %820 = vst [vmem:[#allocation4 + $0x188] sm:$0xf] %v801
      %821 = vst [vmem:[#allocation4 + $0x18c] sm:$0xff] %v803
      %822 = vst [vmem:[#allocation4 + $0x194] sm:$0xf] %v804
      %823 = vst [vmem:[#allocation4 + $0x198] sm:$0xff] %v806
      %824 = vst [vmem:[#allocation4 + $0x1a0] sm:$0xf] %v807
      %825 = vst [vmem:[#allocation4 + $0x1a4] sm:$0xff] %v809
      %826 = vst [vmem:[#allocation4 + $0x1ac] sm:$0xf] %v810
      %v827 = vld [vmem:[%s1] sm:$0xff]
      %v828 = vld [vmem:[%s1 + $0x8] sm:$0xf]
      %v829 = vld [vmem:[%s1 + $0xc] sm:$0xff]
      %v830 = vld [vmem:[%s1 + $0x14] sm:$0xf]
      %v831 = vld [vmem:[%s1 + $0x18] sm:$0xff]
      %v832 = vld [vmem:[%s1 + $0x20] sm:$0xf]
      %v833 = vld [vmem:[%s1 + $0x24] sm:$0xff]
      %v834 = vld [vmem:[%s1 + $0x2c] sm:$0xf]
      %v835 = vld [vmem:[#allocation4] sm:$0xff]
      %v836 = vld [vmem:[#allocation4 + $0x8] sm:$0xf]
      %v837 = vld [vmem:[#allocation4 + $0xc] sm:$0xff]
      %v838 = vld [vmem:[#allocation4 + $0x14] sm:$0xf]
      %v839 = vld [vmem:[#allocation4 + $0x18] sm:$0xff]
      %v840 = vld [vmem:[#allocation4 + $0x20] sm:$0xf]
      %v841 = vld [vmem:[#allocation4 + $0x24] sm:$0xff]
      %v842 = vld [vmem:[#allocation4 + $0x2c] sm:$0xf]
      %v843 = vld [vmem:[#allocation4 + $0x30] sm:$0xff]
      %v844 = vld [vmem:[#allocation4 + $0x38] sm:$0xf]
      %v845 = vld [vmem:[#allocation4 + $0x3c] sm:$0xff]
      %v846 = vld [vmem:[#allocation4 + $0x44] sm:$0xf]
      %v847 = vld [vmem:[#allocation4 + $0x48] sm:$0xff]
      %v848 = vld [vmem:[#allocation4 + $0x50] sm:$0xf]
      %v849 = vld [vmem:[#allocation4 + $0x54] sm:$0xff]
      %v850 = vld [vmem:[#allocation4 + $0x5c] sm:$0xf]
      %v851 = vld [vmem:[#allocation4 + $0x60] sm:$0xff]
      %v852 = vld [vmem:[#allocation4 + $0x68] sm:$0xf]
      %v853 = vld [vmem:[#allocation4 + $0x6c] sm:$0xff]
      %v854 = vld [vmem:[#allocation4 + $0x74] sm:$0xf]
      %v855 = vld [vmem:[#allocation4 + $0x78] sm:$0xff]
      %v856 = vld [vmem:[#allocation4 + $0x80] sm:$0xf]
      %v857 = vld [vmem:[#allocation4 + $0x84] sm:$0xff]
      %v858 = vld [vmem:[#allocation4 + $0x8c] sm:$0xf]
      %v859 = vld [vmem:[#allocation4 + $0x90] sm:$0xff]
      %v860 = vld [vmem:[#allocation4 + $0x98] sm:$0xf]
      %v861 = vld [vmem:[#allocation4 + $0x9c] sm:$0xff]
      %v862 = vld [vmem:[#allocation4 + $0xa4] sm:$0xf]
      %v863 = vld [vmem:[#allocation4 + $0xa8] sm:$0xff]
      %v864 = vld [vmem:[#allocation4 + $0xb0] sm:$0xf]
      %v865 = vld [vmem:[#allocation4 + $0xb4] sm:$0xff]
      %v866 = vld [vmem:[#allocation4 + $0xbc] sm:$0xf]
      %v867 = vld [vmem:[#allocation4 + $0xc0] sm:$0xff]
      %v868 = vld [vmem:[#allocation4 + $0xc8] sm:$0xf]
      %v869 = vld [vmem:[#allocation4 + $0xcc] sm:$0xff]
      %v870 = vld [vmem:[#allocation4 + $0xd4] sm:$0xf]
      %v871 = vld [vmem:[#allocation4 + $0xd8] sm:$0xff]
      %v872 = vld [vmem:[#allocation4 + $0xe0] sm:$0xf]
      %v873 = vld [vmem:[#allocation4 + $0xe4] sm:$0xff]
      %v874 = vld [vmem:[#allocation4 + $0xec] sm:$0xf]
      %v875 = vld [vmem:[#allocation4 + $0xf0] sm:$0xff]
      %v876 = vld [vmem:[#allocation4 + $0xf8] sm:$0xf]
      %v877 = vld [vmem:[#allocation4 + $0xfc] sm:$0xff]
      %v878 = vld [vmem:[#allocation4 + $0x104] sm:$0xf]
      %v879 = vld [vmem:[#allocation4 + $0x108] sm:$0xff]
      %v880 = vld [vmem:[#allocation4 + $0x110] sm:$0xf]
      %v881 = vld [vmem:[#allocation4 + $0x114] sm:$0xff]
      %v882 = vld [vmem:[#allocation4 + $0x11c] sm:$0xf]
      %v883 = vld [vmem:[#allocation4 + $0x120] sm:$0xff]
      %v884 = vld [vmem:[#allocation4 + $0x128] sm:$0xf]
      %v885 = vld [vmem:[#allocation4 + $0x12c] sm:$0xff]
      %v886 = vld [vmem:[#allocation4 + $0x134] sm:$0xf]
      %v887 = vld [vmem:[#allocation4 + $0x138] sm:$0xff]
      %v888 = vld [vmem:[#allocation4 + $0x140] sm:$0xf]
      %v889 = vld [vmem:[#allocation4 + $0x144] sm:$0xff]
      %v890 = vld [vmem:[#allocation4 + $0x14c] sm:$0xf]
      %v891 = vld [vmem:[#allocation4 + $0x150] sm:$0xff]
      %v892 = vld [vmem:[#allocation4 + $0x158] sm:$0xf]
      %v893 = vld [vmem:[#allocation4 + $0x15c] sm:$0xff]
      %v894 = vld [vmem:[#allocation4 + $0x164] sm:$0xf]
      %v895 = vld [vmem:[#allocation4 + $0x168] sm:$0xff]
      %v896 = vld [vmem:[#allocation4 + $0x170] sm:$0xf]
      %v897 = vld [vmem:[#allocation4 + $0x174] sm:$0xff]
      %v898 = vld [vmem:[#allocation4 + $0x17c] sm:$0xf]
      %v899 = vld [vmem:[#allocation4 + $0x180] sm:$0xff]
      %v900 = vld [vmem:[#allocation4 + $0x188] sm:$0xf]
      %v901 = vld [vmem:[#allocation4 + $0x18c] sm:$0xff]
      %v902 = vld [vmem:[#allocation4 + $0x194] sm:$0xf]
      %v903 = vld [vmem:[#allocation4 + $0x198] sm:$0xff]
      %v904 = vld [vmem:[#allocation4 + $0x1a0] sm:$0xf]
      %v905 = vld [vmem:[#allocation4 + $0x1a4] sm:$0xff]
      %v906 = vld [vmem:[#allocation4 + $0x1ac] sm:$0xf]
      %v907 = vlaneseq
      %v908 = vand.u32 %v907, 127
      %v909 = vadd.s32 %v908, 128
      %v910 = vadd.s32 %v908, 256
      %vm911 = vcmp.lt.s32.totalorder %v908, 0
      %v912 = vsub.s32 0, %v908
      %v913 = vsel %vm911, %v912, %v908
      %v914 = vand.u32 %v913, 65535
      %v915 = vshrl.u32 %v913, 16
      %v917 = vmul.u32 %v914, 14564
      %v918 = vmul.u32 %v914, 58254
      %v919 = vmul.u32 %v915, 14564
      %v920 = vmul.u32 %v915, 58254
      %v921 = vshll.u32 %v918, 16
      %v922 = vshrl.u32 %v918, 16
      %v923 = vshll.u32 %v919, 16
      %v924 = vshrl.u32 %v919, 16
      %vm925 = vc.u32 %v917, %v921
      %v926 = vsel %vm925, 1, 0
      %v927 = vadd.s32 %v917, %v921
      %v928 = vadd.s32 %v920, %v926
      %vm929 = vc.u32 %v927, %v923
      %v930 = vsel %vm929, 1, 0
      %v931 = vadd.s32 %v927, %v923
      %v932 = vadd.s32 %v928, %v930
      %v933 = vadd.s32 %v932, %v922
      %v934 = vadd.s32 %v933, %v924
      %v935 = vshrl.u32 %v934, 4
      %v936 = vmul.u32 %v935, 18
      %v937 = vsub.s32 %v913, %v936
      %v938 = vsub.s32 0, %v937
      %v939 = vsel %vm911, %v938, %v937
      %vm940 = vcmp.lt.s32.totalorder %v909, 0
      %v941 = vsub.s32 0, %v909
      %v942 = vsel %vm940, %v941, %v909
      %v943 = vand.u32 %v942, 65535
      %v944 = vshrl.u32 %v942, 16
      %v946 = vmul.u32 %v943, 14564
      %v947 = vmul.u32 %v943, 58254
      %v948 = vmul.u32 %v944, 14564
      %v949 = vmul.u32 %v944, 58254
      %v950 = vshll.u32 %v947, 16
      %v951 = vshrl.u32 %v947, 16
      %v952 = vshll.u32 %v948, 16
      %v953 = vshrl.u32 %v948, 16
      %vm954 = vc.u32 %v946, %v950
      %v955 = vsel %vm954, 1, 0
      %v956 = vadd.s32 %v946, %v950
      %v957 = vadd.s32 %v949, %v955
      %vm958 = vc.u32 %v956, %v952
      %v959 = vsel %vm958, 1, 0
      %v960 = vadd.s32 %v956, %v952
      %v961 = vadd.s32 %v957, %v959
      %v962 = vadd.s32 %v961, %v951
      %v963 = vadd.s32 %v962, %v953
      %v964 = vshrl.u32 %v963, 4
      %v965 = vmul.u32 %v964, 18
      %v966 = vsub.s32 %v942, %v965
      %v967 = vsub.s32 0, %v966
      %v968 = vsel %vm940, %v967, %v966
      %vm969 = vcmp.lt.s32.totalorder %v910, 0
      %v970 = vsub.s32 0, %v910
      %v971 = vsel %vm969, %v970, %v910
      %v972 = vand.u32 %v971, 65535
      %v973 = vshrl.u32 %v971, 16
      %v975 = vmul.u32 %v972, 14564
      %v976 = vmul.u32 %v972, 58254
      %v977 = vmul.u32 %v973, 14564
      %v978 = vmul.u32 %v973, 58254
      %v979 = vshll.u32 %v976, 16
      %v980 = vshrl.u32 %v976, 16
      %v981 = vshll.u32 %v977, 16
      %v982 = vshrl.u32 %v977, 16
      %vm983 = vc.u32 %v975, %v979
      %v984 = vsel %vm983, 1, 0
      %v985 = vadd.s32 %v975, %v979
      %v986 = vadd.s32 %v978, %v984
      %vm987 = vc.u32 %v985, %v981
      %v988 = vsel %vm987, 1, 0
      %v989 = vadd.s32 %v985, %v981
      %v990 = vadd.s32 %v986, %v988
      %v991 = vadd.s32 %v990, %v980
      %v992 = vadd.s32 %v991, %v982
      %v993 = vshrl.u32 %v992, 4
      %v994 = vmul.u32 %v993, 18
      %v995 = vsub.s32 %v971, %v994
      %v996 = vsub.s32 0, %v995
      %v997 = vsel %vm969, %v996, %v995
      %vm998 = vcmp.ne.s32.totalorder %v939, 0
      %vm999 = vcmp.ne.s32.totalorder %v968, 0
      %vm1000 = vcmp.ne.s32.totalorder %v997, 0
      %vm1001 = vcmp.lt.s32.totalorder %v939, 0
      %vm1002 = vcmp.lt.s32.totalorder %v968, 0
      %vm1003 = vcmp.lt.s32.totalorder %v997, 0
      %vm1004 = vmand %vm1001, %vm998
      %vm1005 = vmand %vm1002, %vm999
      %vm1006 = vmand %vm1003, %vm1000
      %v1007 = vadd.s32 %v939, 18
      %v1008 = vadd.s32 %v968, 18
      %v1009 = vadd.s32 %v997, 18
      %v1010 = vsel %vm1004, %v1007, %v939
      %v1011 = vsel %vm1005, %v1008, %v968
      %v1012 = vsel %vm1006, %v1009, %v997
      %vm1013 = vcmp.lt.s32.totalorder %v1010, 16
      %vm1014 = vcmp.lt.s32.totalorder %v1011, 16
      %vm1015 = vcmp.lt.s32.totalorder %v1012, 16
      %vm1016 = vcmp.lt.s32.totalorder %v908, 288
      %vm1017 = vcmp.lt.s32.totalorder %v909, 288
      %vm1018 = vcmp.lt.s32.totalorder %v910, 288
      %vm1019 = vmand %vm1013, %vm1016
      %vm1020 = vmand %vm1014, %vm1017
      %vm1021 = vmand %vm1015, %vm1018
      %v1022 = vsel %vm1019, 1, 0
      %v1023 = vsel %vm1020, 1, 0
      %v1024 = vsel %vm1021, 1, 0
      %v1025 = vcvt.s32.f32 %v1022
      %v1026 = vcvt.s32.f32 %v1023
      %v1027 = vcvt.s32.f32 %v1024
      %v1028 = vld [vmem:[%s2] sm:$0xff]
      %v1029 = vld [vmem:[%s2 + $0x8] sm:$0xff]
      %v1030 = vld [vmem:[%s2 + $0x10] sm:$0xff]
      %v1031 = vld [vmem:[%s2 + $0x18] sm:$0xff]
      %1033 = vset.pattern.permute.xlu0 0
      %1034 = vperm.xlu0 %1033, %v1028
      %v1035 = vpop.permute.xlu0 %1034
      %1038 = vset.pattern.permute.xlu0 0
      %1039 = vperm.xlu0 %1038, %v1029
      %v1040 = vpop.permute.xlu0 %1039
      %1043 = vset.pattern.permute.xlu0 0
      %1044 = vperm.xlu0 %1043, %v1030
      %v1045 = vpop.permute.xlu0 %1044
      %1048 = vset.pattern.permute.xlu0 0
      %1049 = vperm.xlu0 %1048, %v1031
      %v1050 = vpop.permute.xlu0 %1049
      %v1060 = vunpack.c.l.b16 %v827
      %v1061 = vunpack.c.h.b16 %v827
      %v1062 = vunpack.c.l.b16 %v828
      %v1063 = vunpack.c.l.b16 %v829
      %v1064 = vunpack.c.h.b16 %v829
      %v1065 = vunpack.c.l.b16 %v830
      %v1066 = vunpack.c.l.b16 %v831
      %v1067 = vunpack.c.h.b16 %v831
      %v1068 = vunpack.c.l.b16 %v832
      %v1069 = vunpack.c.l.b16 %v833
      %v1070 = vunpack.c.h.b16 %v833
      %v1071 = vunpack.c.l.b16 %v834
      %v1072 = vpack.c.b16 %v1063, %v1060
      %v1073 = vpack.c.b16 %v1064, %v1061
      %v1074 = vpack.c.b16 %v1065, %v1062
      %v1075 = vpack.c.b16 %v1069, %v1066
      %v1076 = vpack.c.b16 %v1070, %v1067
      %v1077 = vpack.c.b16 %v1071, %v1068
      %v1154 = vunpack.c.l.b16 %v835
      %v1155 = vunpack.c.h.b16 %v835
      %v1156 = vunpack.c.l.b16 %v836
      %v1157 = vunpack.c.l.b16 %v837
      %v1158 = vunpack.c.h.b16 %v837
      %v1159 = vunpack.c.l.b16 %v838
      %v1160 = vunpack.c.l.b16 %v839
      %v1161 = vunpack.c.h.b16 %v839
      %v1162 = vunpack.c.l.b16 %v840
      %v1163 = vunpack.c.l.b16 %v841
      %v1164 = vunpack.c.h.b16 %v841
      %v1165 = vunpack.c.l.b16 %v842
      %v1166 = vunpack.c.l.b16 %v843
      %v1167 = vunpack.c.h.b16 %v843
      %v1168 = vunpack.c.l.b16 %v844
      %v1169 = vunpack.c.l.b16 %v845
      %v1170 = vunpack.c.h.b16 %v845
      %v1171 = vunpack.c.l.b16 %v846
      %v1172 = vunpack.c.l.b16 %v847
      %v1173 = vunpack.c.h.b16 %v847
      %v1174 = vunpack.c.l.b16 %v848
      %v1175 = vunpack.c.l.b16 %v849
      %v1176 = vunpack.c.h.b16 %v849
      %v1177 = vunpack.c.l.b16 %v850
      %v1178 = vunpack.c.l.b16 %v851
      %v1179 = vunpack.c.h.b16 %v851
      %v1180 = vunpack.c.l.b16 %v852
      %v1181 = vunpack.c.l.b16 %v853
      %v1182 = vunpack.c.h.b16 %v853
      %v1183 = vunpack.c.l.b16 %v854
      %v1184 = vunpack.c.l.b16 %v855
      %v1185 = vunpack.c.h.b16 %v855
      %v1186 = vunpack.c.l.b16 %v856
      %v1187 = vunpack.c.l.b16 %v857
      %v1188 = vunpack.c.h.b16 %v857
      %v1189 = vunpack.c.l.b16 %v858
      %v1190 = vunpack.c.l.b16 %v859
      %v1191 = vunpack.c.h.b16 %v859
      %v1192 = vunpack.c.l.b16 %v860
      %v1193 = vunpack.c.l.b16 %v861
      %v1194 = vunpack.c.h.b16 %v861
      %v1195 = vunpack.c.l.b16 %v862
      %v1196 = vunpack.c.l.b16 %v863
      %v1197 = vunpack.c.h.b16 %v863
      %v1198 = vunpack.c.l.b16 %v864
      %v1199 = vunpack.c.l.b16 %v865
      %v1200 = vunpack.c.h.b16 %v865
      %v1201 = vunpack.c.l.b16 %v866
      %v1202 = vunpack.c.l.b16 %v867
      %v1203 = vunpack.c.h.b16 %v867
      %v1204 = vunpack.c.l.b16 %v868
      %v1205 = vunpack.c.l.b16 %v869
      %v1206 = vunpack.c.h.b16 %v869
      %v1207 = vunpack.c.l.b16 %v870
      %v1208 = vunpack.c.l.b16 %v871
      %v1209 = vunpack.c.h.b16 %v871
      %v1210 = vunpack.c.l.b16 %v872
      %v1211 = vunpack.c.l.b16 %v873
      %v1212 = vunpack.c.h.b16 %v873
      %v1213 = vunpack.c.l.b16 %v874
      %v1214 = vunpack.c.l.b16 %v875
      %v1215 = vunpack.c.h.b16 %v875
      %v1216 = vunpack.c.l.b16 %v876
      %v1217 = vunpack.c.l.b16 %v877
      %v1218 = vunpack.c.h.b16 %v877
      %v1219 = vunpack.c.l.b16 %v878
      %v1220 = vunpack.c.l.b16 %v879
      %v1221 = vunpack.c.h.b16 %v879
      %v1222 = vunpack.c.l.b16 %v880
      %v1223 = vunpack.c.l.b16 %v881
      %v1224 = vunpack.c.h.b16 %v881
      %v1225 = vunpack.c.l.b16 %v882
      %v1226 = vunpack.c.l.b16 %v883
      %v1227 = vunpack.c.h.b16 %v883
      %v1228 = vunpack.c.l.b16 %v884
      %v1229 = vunpack.c.l.b16 %v885
      %v1230 = vunpack.c.h.b16 %v885
      %v1231 = vunpack.c.l.b16 %v886
      %v1232 = vunpack.c.l.b16 %v887
      %v1233 = vunpack.c.h.b16 %v887
      %v1234 = vunpack.c.l.b16 %v888
      %v1235 = vunpack.c.l.b16 %v889
      %v1236 = vunpack.c.h.b16 %v889
      %v1237 = vunpack.c.l.b16 %v890
      %v1238 = vunpack.c.l.b16 %v891
      %v1239 = vunpack.c.h.b16 %v891
      %v1240 = vunpack.c.l.b16 %v892
      %v1241 = vunpack.c.l.b16 %v893
      %v1242 = vunpack.c.h.b16 %v893
      %v1243 = vunpack.c.l.b16 %v894
      %v1244 = vunpack.c.l.b16 %v895
      %v1245 = vunpack.c.h.b16 %v895
      %v1246 = vunpack.c.l.b16 %v896
      %v1247 = vunpack.c.l.b16 %v897
      %v1248 = vunpack.c.h.b16 %v897
      %v1249 = vunpack.c.l.b16 %v898
      %v1250 = vunpack.c.l.b16 %v899
      %v1251 = vunpack.c.h.b16 %v899
      %v1252 = vunpack.c.l.b16 %v900
      %v1253 = vunpack.c.l.b16 %v901
      %v1254 = vunpack.c.h.b16 %v901
      %v1255 = vunpack.c.l.b16 %v902
      %v1256 = vunpack.c.l.b16 %v903
      %v1257 = vunpack.c.h.b16 %v903
      %v1258 = vunpack.c.l.b16 %v904
      %v1259 = vunpack.c.l.b16 %v905
      %v1260 = vunpack.c.h.b16 %v905
      %v1261 = vunpack.c.l.b16 %v906
      %v1262 = vpack.c.b16 %v1157, %v1154
      %v1263 = vpack.c.b16 %v1158, %v1155
      %v1264 = vpack.c.b16 %v1159, %v1156
      %v1265 = vpack.c.b16 %v1163, %v1160
      %v1266 = vpack.c.b16 %v1164, %v1161
      %v1267 = vpack.c.b16 %v1165, %v1162
      %v1268 = vpack.c.b16 %v1169, %v1166
      %v1269 = vpack.c.b16 %v1170, %v1167
      %v1270 = vpack.c.b16 %v1171, %v1168
      %v1271 = vpack.c.b16 %v1175, %v1172
      %v1272 = vpack.c.b16 %v1176, %v1173
      %v1273 = vpack.c.b16 %v1177, %v1174
      %v1274 = vpack.c.b16 %v1181, %v1178
      %v1275 = vpack.c.b16 %v1182, %v1179
      %v1276 = vpack.c.b16 %v1183, %v1180
      %v1277 = vpack.c.b16 %v1187, %v1184
      %v1278 = vpack.c.b16 %v1188, %v1185
      %v1279 = vpack.c.b16 %v1189, %v1186
      %v1280 = vpack.c.b16 %v1193, %v1190
      %v1281 = vpack.c.b16 %v1194, %v1191
      %v1282 = vpack.c.b16 %v1195, %v1192
      %v1283 = vpack.c.b16 %v1199, %v1196
      %v1284 = vpack.c.b16 %v1200, %v1197
      %v1285 = vpack.c.b16 %v1201, %v1198
      %v1286 = vpack.c.b16 %v1205, %v1202
      %v1287 = vpack.c.b16 %v1206, %v1203
      %v1288 = vpack.c.b16 %v1207, %v1204
      %v1289 = vpack.c.b16 %v1211, %v1208
      %v1290 = vpack.c.b16 %v1212, %v1209
      %v1291 = vpack.c.b16 %v1213, %v1210
      %v1292 = vpack.c.b16 %v1217, %v1214
      %v1293 = vpack.c.b16 %v1218, %v1215
      %v1294 = vpack.c.b16 %v1219, %v1216
      %v1295 = vpack.c.b16 %v1223, %v1220
      %v1296 = vpack.c.b16 %v1224, %v1221
      %v1297 = vpack.c.b16 %v1225, %v1222
      %v1298 = vpack.c.b16 %v1229, %v1226
      %v1299 = vpack.c.b16 %v1230, %v1227
      %v1300 = vpack.c.b16 %v1231, %v1228
      %v1301 = vpack.c.b16 %v1235, %v1232
      %v1302 = vpack.c.b16 %v1236, %v1233
      %v1303 = vpack.c.b16 %v1237, %v1234
      %v1304 = vpack.c.b16 %v1241, %v1238
      %v1305 = vpack.c.b16 %v1242, %v1239
      %v1306 = vpack.c.b16 %v1243, %v1240
      %v1307 = vpack.c.b16 %v1247, %v1244
      %v1308 = vpack.c.b16 %v1248, %v1245
      %v1309 = vpack.c.b16 %v1249, %v1246
      %v1310 = vpack.c.b16 %v1253, %v1250
      %v1311 = vpack.c.b16 %v1254, %v1251
      %v1312 = vpack.c.b16 %v1255, %v1252
      %v1313 = vpack.c.b16 %v1259, %v1256
      %v1314 = vpack.c.b16 %v1260, %v1257
      %v1315 = vpack.c.b16 %v1261, %v1258
      %vm1370 = vcmask 261120
      %v1372 = vsel %vm1370, %v1074, 0
      %v1375 = vsel %vm1370, %v1077, 0
      %1377 = vmatpush.bf16.msra.mxu0 %v1283
      %1378 = vmatpush.bf16.msra.mxu0 %v1280
      %1379 = vmatpush.bf16.msra.mxu0 %v1277
      %1380 = vmatpush.bf16.msra.mxu0 %v1274
      %1381 = vmatpush.bf16.msra.mxu0 %v1271
      %1382 = vmatpush.bf16.msra.mxu0 %v1268
      %1383 = vmatpush.bf16.msra.mxu0 %v1265
      %1384 = vmatpush.bf16.msra.mxu0 %v1262
      %1385 = vmatmul.bf16.gmra.mxu0 %v1072
      %v1386 = vpop.f32.mrf.mxu0
      %v1387 = vadd.f32 %v1035, %v1386
      %v1388 = vpop.f32.mrf.mxu0
      %v1389 = vadd.f32 %v1040, %v1388
      %1390 = vmatmul.bf16.gmra.mxu0 %v1075
      %v1391 = vpop.f32.mrf.mxu0
      %v1392 = vadd.f32 %v1045, %v1391
      %v1393 = vpop.f32.mrf.mxu0
      %v1394 = vadd.f32 %v1050, %v1393
      %1395 = vdwg.mxu0
      %1396 = vmatpush.bf16.msra.mxu0 %v1307
      %1397 = vmatpush.bf16.msra.mxu0 %v1304
      %1398 = vmatpush.bf16.msra.mxu0 %v1301
      %1399 = vmatpush.bf16.msra.mxu0 %v1298
      %1400 = vmatpush.bf16.msra.mxu0 %v1295
      %1401 = vmatpush.bf16.msra.mxu0 %v1292
      %1402 = vmatpush.bf16.msra.mxu0 %v1289
      %1403 = vmatpush.bf16.msra.mxu0 %v1286
      %1404 = vmatmul.bf16.gmra.mxu0 %v1073
      %v1405 = vpop.f32.mrf.mxu0
      %v1406 = vadd.f32 %v1387, %v1405
      %v1407 = vpop.f32.mrf.mxu0
      %v1408 = vadd.f32 %v1389, %v1407
      %1409 = vmatmul.bf16.gmra.mxu0 %v1076
      %v1410 = vpop.f32.mrf.mxu0
      %v1411 = vadd.f32 %v1392, %v1410
      %v1412 = vpop.f32.mrf.mxu0
      %v1413 = vadd.f32 %v1394, %v1412
      %1414 = vdwg.mxu0
      %1415 = vmatpush.bf16.msra.mxu0 0
      %1416 = vmatpush.bf16.msra.mxu0 0
      %1417 = vmatpush.bf16.msra.mxu0 0
      %1418 = vmatpush.bf16.msra.mxu0 0
      %1419 = vmatpush.bf16.msra.mxu0 0
      %1420 = vmatpush.bf16.msra.mxu0 0
      %1421 = vmatpush.bf16.msra.mxu0 %v1313
      %1422 = vmatpush.bf16.msra.mxu0 %v1310
      %1423 = vmatmul.bf16.gmra.mxu0 %v1372
      %v1424 = vpop.f32.mrf.mxu0
      %v1425 = vadd.f32 %v1406, %v1424
      %v1426 = vpop.f32.mrf.mxu0
      %v1427 = vadd.f32 %v1408, %v1426
      %1428 = vmatmul.bf16.gmra.mxu0 %v1375
      %v1429 = vpop.f32.mrf.mxu0
      %v1430 = vadd.f32 %v1411, %v1429
      %v1431 = vpop.f32.mrf.mxu0
      %v1432 = vadd.f32 %v1413, %v1431
      %1433 = vdwg.mxu0
      %1434 = vmatpush.bf16.msra.mxu0 %v1284
      %1435 = vmatpush.bf16.msra.mxu0 %v1281
      %1436 = vmatpush.bf16.msra.mxu0 %v1278
      %1437 = vmatpush.bf16.msra.mxu0 %v1275
      %1438 = vmatpush.bf16.msra.mxu0 %v1272
      %1439 = vmatpush.bf16.msra.mxu0 %v1269
      %1440 = vmatpush.bf16.msra.mxu0 %v1266
      %1441 = vmatpush.bf16.msra.mxu0 %v1263
      %1442 = vmatmul.bf16.gmra.mxu0 %v1072
      %v1443 = vpop.f32.mrf.mxu0
      %v1444 = vadd.f32 %v1035, %v1443
      %v1445 = vpop.f32.mrf.mxu0
      %v1446 = vadd.f32 %v1040, %v1445
      %1447 = vmatmul.bf16.gmra.mxu0 %v1075
      %v1448 = vpop.f32.mrf.mxu0
      %v1449 = vadd.f32 %v1045, %v1448
      %v1450 = vpop.f32.mrf.mxu0
      %v1451 = vadd.f32 %v1050, %v1450
      %1452 = vdwg.mxu0
      %1453 = vmatpush.bf16.msra.mxu0 %v1308
      %1454 = vmatpush.bf16.msra.mxu0 %v1305
      %1455 = vmatpush.bf16.msra.mxu0 %v1302
      %1456 = vmatpush.bf16.msra.mxu0 %v1299
      %1457 = vmatpush.bf16.msra.mxu0 %v1296
      %1458 = vmatpush.bf16.msra.mxu0 %v1293
      %1459 = vmatpush.bf16.msra.mxu0 %v1290
      %1460 = vmatpush.bf16.msra.mxu0 %v1287
      %1461 = vmatmul.bf16.gmra.mxu0 %v1073
      %v1462 = vpop.f32.mrf.mxu0
      %v1463 = vadd.f32 %v1444, %v1462
      %v1464 = vpop.f32.mrf.mxu0
      %v1465 = vadd.f32 %v1446, %v1464
      %1466 = vmatmul.bf16.gmra.mxu0 %v1076
      %v1467 = vpop.f32.mrf.mxu0
      %v1468 = vadd.f32 %v1449, %v1467
      %v1469 = vpop.f32.mrf.mxu0
      %v1470 = vadd.f32 %v1451, %v1469
      %1471 = vdwg.mxu0
      %1472 = vmatpush.bf16.msra.mxu0 0
      %1473 = vmatpush.bf16.msra.mxu0 0
      %1474 = vmatpush.bf16.msra.mxu0 0
      %1475 = vmatpush.bf16.msra.mxu0 0
      %1476 = vmatpush.bf16.msra.mxu0 0
      %1477 = vmatpush.bf16.msra.mxu0 0
      %1478 = vmatpush.bf16.msra.mxu0 %v1314
      %1479 = vmatpush.bf16.msra.mxu0 %v1311
      %1480 = vmatmul.bf16.gmra.mxu0 %v1372
      %v1481 = vpop.f32.mrf.mxu0
      %v1482 = vadd.f32 %v1463, %v1481
      %v1483 = vpop.f32.mrf.mxu0
      %v1484 = vadd.f32 %v1465, %v1483
      %1485 = vmatmul.bf16.gmra.mxu0 %v1375
      %v1486 = vpop.f32.mrf.mxu0
      %v1487 = vadd.f32 %v1468, %v1486
      %v1488 = vpop.f32.mrf.mxu0
      %v1489 = vadd.f32 %v1470, %v1488
      %1490 = vdwg.mxu0
      %1491 = vmatpush.bf16.msra.mxu0 %v1285
      %1492 = vmatpush.bf16.msra.mxu0 %v1282
      %1493 = vmatpush.bf16.msra.mxu0 %v1279
      %1494 = vmatpush.bf16.msra.mxu0 %v1276
      %1495 = vmatpush.bf16.msra.mxu0 %v1273
      %1496 = vmatpush.bf16.msra.mxu0 %v1270
      %1497 = vmatpush.bf16.msra.mxu0 %v1267
      %1498 = vmatpush.bf16.msra.mxu0 %v1264
      %1499 = vmatmul.bf16.gmra.mxu0 %v1072
      %v1500 = vpop.f32.mrf.mxu0
      %v1501 = vadd.f32 %v1035, %v1500
      %v1502 = vpop.f32.mrf.mxu0
      %v1503 = vadd.f32 %v1040, %v1502
      %1504 = vmatmul.bf16.gmra.mxu0 %v1075
      %v1505 = vpop.f32.mrf.mxu0
      %v1506 = vadd.f32 %v1045, %v1505
      %v1507 = vpop.f32.mrf.mxu0
      %v1508 = vadd.f32 %v1050, %v1507
      %1509 = vdwg.mxu0
      %1510 = vmatpush.bf16.msra.mxu0 %v1309
      %1511 = vmatpush.bf16.msra.mxu0 %v1306
      %1512 = vmatpush.bf16.msra.mxu0 %v1303
      %1513 = vmatpush.bf16.msra.mxu0 %v1300
      %1514 = vmatpush.bf16.msra.mxu0 %v1297
      %1515 = vmatpush.bf16.msra.mxu0 %v1294
      %1516 = vmatpush.bf16.msra.mxu0 %v1291
      %1517 = vmatpush.bf16.msra.mxu0 %v1288
      %1518 = vmatmul.bf16.gmra.mxu0 %v1073
      %v1519 = vpop.f32.mrf.mxu0
      %v1520 = vadd.f32 %v1501, %v1519
      %v1521 = vpop.f32.mrf.mxu0
      %v1522 = vadd.f32 %v1503, %v1521
      %1523 = vmatmul.bf16.gmra.mxu0 %v1076
      %v1524 = vpop.f32.mrf.mxu0
      %v1525 = vadd.f32 %v1506, %v1524
      %v1526 = vpop.f32.mrf.mxu0
      %v1527 = vadd.f32 %v1508, %v1526
      %1528 = vdwg.mxu0
      %1529 = vmatpush.bf16.msra.mxu0 0
      %1530 = vmatpush.bf16.msra.mxu0 0
      %1531 = vmatpush.bf16.msra.mxu0 0
      %1532 = vmatpush.bf16.msra.mxu0 0
      %1533 = vmatpush.bf16.msra.mxu0 0
      %1534 = vmatpush.bf16.msra.mxu0 0
      %1535 = vmatpush.bf16.msra.mxu0 %v1315
      %1536 = vmatpush.bf16.msra.mxu0 %v1312
      %1537 = vmatmul.bf16.gmra.mxu0 %v1372
      %v1538 = vpop.f32.mrf.mxu0
      %v1539 = vadd.f32 %v1520, %v1538
      %v1540 = vpop.f32.mrf.mxu0
      %v1541 = vadd.f32 %v1522, %v1540
      %1542 = vmatmul.bf16.gmra.mxu0 %v1375
      %v1543 = vpop.f32.mrf.mxu0
      %v1544 = vadd.f32 %v1525, %v1543
      %v1545 = vpop.f32.mrf.mxu0
      %v1546 = vadd.f32 %v1527, %v1545
      %1547 = vdwg.mxu0
      %v1548 = vmax.f32 %v1425, 0.0
      %v1549 = vmax.f32 %v1482, 0.0
      %v1550 = vmax.f32 %v1539, 0.0
      %v1551 = vmax.f32 %v1427, 0.0
      %v1552 = vmax.f32 %v1484, 0.0
      %v1553 = vmax.f32 %v1541, 0.0
      %v1554 = vmax.f32 %v1430, 0.0
      %v1555 = vmax.f32 %v1487, 0.0
      %v1556 = vmax.f32 %v1544, 0.0
      %v1557 = vmax.f32 %v1432, 0.0
      %v1558 = vmax.f32 %v1489, 0.0
      %v1559 = vmax.f32 %v1546, 0.0
      %v1560 = vmul.f32 %v1548, %v1025
      %v1561 = vmul.f32 %v1549, %v1026
      %v1562 = vmul.f32 %v1550, %v1027
      %v1563 = vmul.f32 %v1551, %v1025
      %v1564 = vmul.f32 %v1552, %v1026
      %v1565 = vmul.f32 %v1553, %v1027
      %v1566 = vmul.f32 %v1554, %v1025
      %v1567 = vmul.f32 %v1555, %v1026
      %v1568 = vmul.f32 %v1556, %v1027
      %v1569 = vmul.f32 %v1557, %v1025
      %v1570 = vmul.f32 %v1558, %v1026
      %v1571 = vmul.f32 %v1559, %v1027
      %vm1572 = vcmask 150528
      %1573 = vst.msk [vmem:[#allocation3] sm:$0xf] %vm1572, 0
      %1574 = vst.msk [vmem:[#allocation3 + $0x10] sm:$0xf] %vm1572, 0
      %1575 = vst.msk [vmem:[#allocation3 + $0x20] sm:$0xf] %vm1572, 0
      %1576 = vst.msk [vmem:[#allocation3 + $0x30] sm:$0xf] %vm1572, 0
      %vm1577 = vcmask 1043608
      %1578 = vst.msk [vmem:[#allocation3 + $0xc] sm:$0xf] %vm1577, 0
      %1579 = vst.msk [vmem:[#allocation3 + $0x1c] sm:$0xf] %vm1577, 0
      %1580 = vst.msk [vmem:[#allocation3 + $0x2c] sm:$0xf] %vm1577, 0
      %1581 = vst.msk [vmem:[#allocation3 + $0x3c] sm:$0xf] %vm1577, 0
      %v1582 = vpack.c.bf16 %v1561, %v1560
      %v1583 = vpack.c.bf16 %v1562, %v1562
      %v1584 = vpack.c.bf16 %v1564, %v1563
      %v1585 = vpack.c.bf16 %v1565, %v1565
      %v1586 = vpack.c.bf16 %v1567, %v1566
      %v1587 = vpack.c.bf16 %v1568, %v1568
      %v1588 = vpack.c.bf16 %v1570, %v1569
      %v1589 = vpack.c.bf16 %v1571, %v1571
      %1598 = vrot.lane.b32.xlu0 %v1582, 19
      %v1599 = vpop.permute.xlu0 %1598
      %1600 = vrot.lane.b32.xlu0 %v1583, 19
      %v1601 = vpop.permute.xlu0 %1600
      %1602 = vrot.lane.b32.xlu0 %v1584, 19
      %v1603 = vpop.permute.xlu0 %1602
      %1604 = vrot.lane.b32.xlu0 %v1585, 19
      %v1605 = vpop.permute.xlu0 %1604
      %1606 = vrot.lane.b32.xlu0 %v1586, 19
      %v1607 = vpop.permute.xlu0 %1606
      %1608 = vrot.lane.b32.xlu0 %v1587, 19
      %v1609 = vpop.permute.xlu0 %1608
      %1610 = vrot.lane.b32.xlu0 %v1588, 19
      %v1611 = vpop.permute.xlu0 %1610
      %1612 = vrot.lane.b32.xlu0 %v1589, 19
      %v1613 = vpop.permute.xlu0 %1612
      %v1614 = vrot.slane %v1599, 4
      %v1615 = vrot.slane %v1601, 4
      %v1616 = vrot.slane %v1603, 4
      %v1617 = vrot.slane %v1605, 4
      %v1618 = vrot.slane %v1607, 4
      %v1619 = vrot.slane %v1609, 4
      %v1620 = vrot.slane %v1611, 4
      %v1621 = vrot.slane %v1613, 4
      %vm1622 = vcmask 154624
      %v1623 = vsel %vm1622, %v1614, %v1599
      %v1624 = vsel %vm314, %v1614, %v1615
      %v1625 = vsel %vm1622, %v1624, %v1601
      %v1626 = vsel %vm1622, %v1616, %v1603
      %v1627 = vsel %vm314, %v1616, %v1617
      %v1628 = vsel %vm1622, %v1627, %v1605
      %v1629 = vsel %vm1622, %v1618, %v1607
      %v1630 = vsel %vm314, %v1618, %v1619
      %v1631 = vsel %vm1622, %v1630, %v1609
      %v1632 = vsel %vm1622, %v1620, %v1611
      %v1633 = vsel %vm314, %v1620, %v1621
      %v1634 = vsel %vm1622, %v1633, %v1613
      %vm1643 = vcmask 1047556
      %vm1644 = vmor %vm1643, %vm1577
      %1645 = vst.msk [vmem:[#allocation3] sm:$0xff] %vm1644, %v1623
      %vm1646 = vcmask 1043456
      %vm1647 = vcmask 154628
      %vm1648 = vmor %vm1647, %vm1646
      %1649 = vst.msk [vmem:[#allocation3 + $0x8] sm:$0xff] %vm1648, %v1625
      %1650 = vst.msk [vmem:[#allocation3 + $0x10] sm:$0xff] %vm1644, %v1626
      %1651 = vst.msk [vmem:[#allocation3 + $0x18] sm:$0xff] %vm1648, %v1628
      %1652 = vst.msk [vmem:[#allocation3 + $0x20] sm:$0xff] %vm1644, %v1629
      %1653 = vst.msk [vmem:[#allocation3 + $0x28] sm:$0xff] %vm1648, %v1631
      %1654 = vst.msk [vmem:[#allocation3 + $0x30] sm:$0xff] %vm1644, %v1632
      %1655 = vst.msk [vmem:[#allocation3 + $0x38] sm:$0xff] %vm1648, %v1634
      %v1656 = vld [vmem:[#allocation3] sm:$0xff]
      %v1657 = vld [vmem:[#allocation3 + $0x8] sm:$0xf]
      %v1658 = vld [vmem:[#allocation3 + $0x10] sm:$0xff]
      %v1659 = vld [vmem:[#allocation3 + $0x18] sm:$0xf]
      %v1660 = vld [vmem:[#allocation3 + $0x20] sm:$0xff]
      %v1661 = vld [vmem:[#allocation3 + $0x28] sm:$0xf]
      %v1662 = vld [vmem:[#allocation3 + $0x30] sm:$0xff]
      %v1663 = vld [vmem:[#allocation3 + $0x38] sm:$0xf]
      %1664 = vst [vmem:[#allocation4] sm:$0xff] %v1656
      %1665 = vst [vmem:[#allocation4 + $0x8] sm:$0xf] %v1657
      %1666 = vst [vmem:[#allocation4 + $0xc] sm:$0xff] %v1658
      %1667 = vst [vmem:[#allocation4 + $0x14] sm:$0xf] %v1659
      %1668 = vst [vmem:[#allocation4 + $0x18] sm:$0xff] %v1660
      %1669 = vst [vmem:[#allocation4 + $0x20] sm:$0xf] %v1661
      %1670 = vst [vmem:[#allocation4 + $0x24] sm:$0xff] %v1662
      %1671 = vst [vmem:[#allocation4 + $0x2c] sm:$0xf] %v1663
      %v1672 = vld [vmem:[#allocation3] sm:$0xff]
      %v1673 = vld [vmem:[#allocation3 + $0x8] sm:$0xff]
      %v1674 = vld [vmem:[#allocation3 + $0x10] sm:$0xff]
      %v1675 = vld [vmem:[#allocation3 + $0x18] sm:$0xff]
      %v1676 = vld [vmem:[#allocation3 + $0x20] sm:$0xff]
      %v1677 = vld [vmem:[#allocation3 + $0x28] sm:$0xff]
      %v1678 = vld [vmem:[#allocation3 + $0x30] sm:$0xff]
      %v1679 = vld [vmem:[#allocation3 + $0x38] sm:$0xff]
      %1688 = vrot.lane.b32.xlu0 %v1672, 127
      %v1689 = vpop.permute.xlu0 %1688
      %1690 = vrot.lane.b32.xlu0 %v1673, 127
      %v1691 = vpop.permute.xlu0 %1690
      %1692 = vrot.lane.b32.xlu0 %v1674, 127
      %v1693 = vpop.permute.xlu0 %1692
      %1694 = vrot.lane.b32.xlu0 %v1675, 127
      %v1695 = vpop.permute.xlu0 %1694
      %1696 = vrot.lane.b32.xlu0 %v1676, 127
      %v1697 = vpop.permute.xlu0 %1696
      %1698 = vrot.lane.b32.xlu0 %v1677, 127
      %v1699 = vpop.permute.xlu0 %1698
      %1700 = vrot.lane.b32.xlu0 %v1678, 127
      %v1701 = vpop.permute.xlu0 %1700
      %1702 = vrot.lane.b32.xlu0 %v1679, 127
      %v1703 = vpop.permute.xlu0 %1702
      %v1704 = vrot.slane %v1689, 4
      %v1705 = vrot.slane %v1691, 4
      %v1706 = vrot.slane %v1693, 4
      %v1707 = vrot.slane %v1695, 4
      %v1708 = vrot.slane %v1697, 4
      %v1709 = vrot.slane %v1699, 4
      %v1710 = vrot.slane %v1701, 4
      %v1711 = vrot.slane %v1703, 4
      %v1712 = vsel %vm314, %v1704, %v1705
      %v1713 = vsel %vm316, %v1689, %v1712
      %v1714 = vsel %vm316, %v1691, %v1705
      %v1715 = vsel %vm314, %v1706, %v1707
      %v1716 = vsel %vm316, %v1693, %v1715
      %v1717 = vsel %vm316, %v1695, %v1707
      %v1718 = vsel %vm314, %v1708, %v1709
      %v1719 = vsel %vm316, %v1697, %v1718
      %v1720 = vsel %vm316, %v1699, %v1709
      %v1721 = vsel %vm314, %v1710, %v1711
      %v1722 = vsel %vm316, %v1701, %v1721
      %v1723 = vsel %vm316, %v1703, %v1711
      %1732 = vst [vmem:[#allocation4 + $0x30] sm:$0xff] %v1713
      %1733 = vst [vmem:[#allocation4 + $0x38] sm:$0xf] %v1714
      %1734 = vst [vmem:[#allocation4 + $0x3c] sm:$0xff] %v1716
      %1735 = vst [vmem:[#allocation4 + $0x44] sm:$0xf] %v1717
      %1736 = vst [vmem:[#allocation4 + $0x48] sm:$0xff] %v1719
      %1737 = vst [vmem:[#allocation4 + $0x50] sm:$0xf] %v1720
      %1738 = vst [vmem:[#allocation4 + $0x54] sm:$0xff] %v1722
      %1739 = vst [vmem:[#allocation4 + $0x5c] sm:$0xf] %v1723
      %v1740 = vld [vmem:[#allocation3] sm:$0xff]
      %v1741 = vld [vmem:[#allocation3 + $0x8] sm:$0xff]
      %v1742 = vld [vmem:[#allocation3 + $0x10] sm:$0xff]
      %v1743 = vld [vmem:[#allocation3 + $0x18] sm:$0xff]
      %v1744 = vld [vmem:[#allocation3 + $0x20] sm:$0xff]
      %v1745 = vld [vmem:[#allocation3 + $0x28] sm:$0xff]
      %v1746 = vld [vmem:[#allocation3 + $0x30] sm:$0xff]
      %v1747 = vld [vmem:[#allocation3 + $0x38] sm:$0xff]
      %1756 = vrot.lane.b32.xlu0 %v1740, 126
      %v1757 = vpop.permute.xlu0 %1756
      %1758 = vrot.lane.b32.xlu0 %v1741, 126
      %v1759 = vpop.permute.xlu0 %1758
      %1760 = vrot.lane.b32.xlu0 %v1742, 126
      %v1761 = vpop.permute.xlu0 %1760
      %1762 = vrot.lane.b32.xlu0 %v1743, 126
      %v1763 = vpop.permute.xlu0 %1762
      %1764 = vrot.lane.b32.xlu0 %v1744, 126
      %v1765 = vpop.permute.xlu0 %1764
      %1766 = vrot.lane.b32.xlu0 %v1745, 126
      %v1767 = vpop.permute.xlu0 %1766
      %1768 = vrot.lane.b32.xlu0 %v1746, 126
      %v1769 = vpop.permute.xlu0 %1768
      %1770 = vrot.lane.b32.xlu0 %v1747, 126
      %v1771 = vpop.permute.xlu0 %1770
      %v1772 = vrot.slane %v1757, 4
      %v1773 = vrot.slane %v1759, 4
      %v1774 = vrot.slane %v1761, 4
      %v1775 = vrot.slane %v1763, 4
      %v1776 = vrot.slane %v1765, 4
      %v1777 = vrot.slane %v1767, 4
      %v1778 = vrot.slane %v1769, 4
      %v1779 = vrot.slane %v1771, 4
      %v1780 = vsel %vm314, %v1772, %v1773
      %v1781 = vsel %vm385, %v1757, %v1780
      %v1782 = vsel %vm385, %v1759, %v1773
      %v1783 = vsel %vm314, %v1774, %v1775
      %v1784 = vsel %vm385, %v1761, %v1783
      %v1785 = vsel %vm385, %v1763, %v1775
      %v1786 = vsel %vm314, %v1776, %v1777
      %v1787 = vsel %vm385, %v1765, %v1786
      %v1788 = vsel %vm385, %v1767, %v1777
      %v1789 = vsel %vm314, %v1778, %v1779
      %v1790 = vsel %vm385, %v1769, %v1789
      %v1791 = vsel %vm385, %v1771, %v1779
      %1800 = vst [vmem:[#allocation4 + $0x60] sm:$0xff] %v1781
      %1801 = vst [vmem:[#allocation4 + $0x68] sm:$0xf] %v1782
      %1802 = vst [vmem:[#allocation4 + $0x6c] sm:$0xff] %v1784
      %1803 = vst [vmem:[#allocation4 + $0x74] sm:$0xf] %v1785
      %1804 = vst [vmem:[#allocation4 + $0x78] sm:$0xff] %v1787
      %1805 = vst [vmem:[#allocation4 + $0x80] sm:$0xf] %v1788
      %1806 = vst [vmem:[#allocation4 + $0x84] sm:$0xff] %v1790
      %1807 = vst [vmem:[#allocation4 + $0x8c] sm:$0xf] %v1791
      %v1808 = vld [vmem:[#allocation3] sm:$0xff]
      %v1809 = vld [vmem:[#allocation3 + $0x8] sm:$0xff]
      %v1810 = vld [vmem:[#allocation3 + $0x10] sm:$0xff]
      %v1811 = vld [vmem:[#allocation3 + $0x18] sm:$0xff]
      %v1812 = vld [vmem:[#allocation3 + $0x20] sm:$0xff]
      %v1813 = vld [vmem:[#allocation3 + $0x28] sm:$0xff]
      %v1814 = vld [vmem:[#allocation3 + $0x30] sm:$0xff]
      %v1815 = vld [vmem:[#allocation3 + $0x38] sm:$0xff]
      %1824 = vrot.lane.b32.xlu0 %v1808, 110
      %v1825 = vpop.permute.xlu0 %1824
      %1826 = vrot.lane.b32.xlu0 %v1809, 110
      %v1827 = vpop.permute.xlu0 %1826
      %1828 = vrot.lane.b32.xlu0 %v1810, 110
      %v1829 = vpop.permute.xlu0 %1828
      %1830 = vrot.lane.b32.xlu0 %v1811, 110
      %v1831 = vpop.permute.xlu0 %1830
      %1832 = vrot.lane.b32.xlu0 %v1812, 110
      %v1833 = vpop.permute.xlu0 %1832
      %1834 = vrot.lane.b32.xlu0 %v1813, 110
      %v1835 = vpop.permute.xlu0 %1834
      %1836 = vrot.lane.b32.xlu0 %v1814, 110
      %v1837 = vpop.permute.xlu0 %1836
      %1838 = vrot.lane.b32.xlu0 %v1815, 110
      %v1839 = vpop.permute.xlu0 %1838
      %v1840 = vrot.slane %v1825, 4
      %v1841 = vrot.slane %v1827, 4
      %v1842 = vrot.slane %v1829, 4
      %v1843 = vrot.slane %v1831, 4
      %v1844 = vrot.slane %v1833, 4
      %v1845 = vrot.slane %v1835, 4
      %v1846 = vrot.slane %v1837, 4
      %v1847 = vrot.slane %v1839, 4
      %v1848 = vsel %vm314, %v1840, %v1841
      %v1849 = vsel %vm454, %v1825, %v1848
      %v1850 = vsel %vm454, %v1827, %v1841
      %v1851 = vsel %vm314, %v1842, %v1843
      %v1852 = vsel %vm454, %v1829, %v1851
      %v1853 = vsel %vm454, %v1831, %v1843
      %v1854 = vsel %vm314, %v1844, %v1845
      %v1855 = vsel %vm454, %v1833, %v1854
      %v1856 = vsel %vm454, %v1835, %v1845
      %v1857 = vsel %vm314, %v1846, %v1847
      %v1858 = vsel %vm454, %v1837, %v1857
      %v1859 = vsel %vm454, %v1839, %v1847
      %1868 = vst [vmem:[#allocation4 + $0x90] sm:$0xff] %v1849
      %1869 = vst [vmem:[#allocation4 + $0x98] sm:$0xf] %v1850
      %1870 = vst [vmem:[#allocation4 + $0x9c] sm:$0xff] %v1852
      %1871 = vst [vmem:[#allocation4 + $0xa4] sm:$0xf] %v1853
      %1872 = vst [vmem:[#allocation4 + $0xa8] sm:$0xff] %v1855
      %1873 = vst [vmem:[#allocation4 + $0xb0] sm:$0xf] %v1856
      %1874 = vst [vmem:[#allocation4 + $0xb4] sm:$0xff] %v1858
      %1875 = vst [vmem:[#allocation4 + $0xbc] sm:$0xf] %v1859
      %v1876 = vld [vmem:[#allocation3] sm:$0xff]
      %v1877 = vld [vmem:[#allocation3 + $0x8] sm:$0xff]
      %v1878 = vld [vmem:[#allocation3 + $0x10] sm:$0xff]
      %v1879 = vld [vmem:[#allocation3 + $0x18] sm:$0xff]
      %v1880 = vld [vmem:[#allocation3 + $0x20] sm:$0xff]
      %v1881 = vld [vmem:[#allocation3 + $0x28] sm:$0xff]
      %v1882 = vld [vmem:[#allocation3 + $0x30] sm:$0xff]
      %v1883 = vld [vmem:[#allocation3 + $0x38] sm:$0xff]
      %1892 = vrot.lane.b32.xlu0 %v1876, 109
      %v1893 = vpop.permute.xlu0 %1892
      %1894 = vrot.lane.b32.xlu0 %v1877, 109
      %v1895 = vpop.permute.xlu0 %1894
      %1896 = vrot.lane.b32.xlu0 %v1878, 109
      %v1897 = vpop.permute.xlu0 %1896
      %1898 = vrot.lane.b32.xlu0 %v1879, 109
      %v1899 = vpop.permute.xlu0 %1898
      %1900 = vrot.lane.b32.xlu0 %v1880, 109
      %v1901 = vpop.permute.xlu0 %1900
      %1902 = vrot.lane.b32.xlu0 %v1881, 109
      %v1903 = vpop.permute.xlu0 %1902
      %1904 = vrot.lane.b32.xlu0 %v1882, 109
      %v1905 = vpop.permute.xlu0 %1904
      %1906 = vrot.lane.b32.xlu0 %v1883, 109
      %v1907 = vpop.permute.xlu0 %1906
      %v1908 = vrot.slane %v1893, 4
      %v1909 = vrot.slane %v1895, 4
      %v1910 = vrot.slane %v1897, 4
      %v1911 = vrot.slane %v1899, 4
      %v1912 = vrot.slane %v1901, 4
      %v1913 = vrot.slane %v1903, 4
      %v1914 = vrot.slane %v1905, 4
      %v1915 = vrot.slane %v1907, 4
      %v1916 = vsel %vm314, %v1908, %v1909
      %v1917 = vsel %vm523, %v1893, %v1916
      %v1918 = vsel %vm523, %v1895, %v1909
      %v1919 = vsel %vm314, %v1910, %v1911
      %v1920 = vsel %vm523, %v1897, %v1919
      %v1921 = vsel %vm523, %v1899, %v1911
      %v1922 = vsel %vm314, %v1912, %v1913
      %v1923 = vsel %vm523, %v1901, %v1922
      %v1924 = vsel %vm523, %v1903, %v1913
      %v1925 = vsel %vm314, %v1914, %v1915
      %v1926 = vsel %vm523, %v1905, %v1925
      %v1927 = vsel %vm523, %v1907, %v1915
      %1936 = vst [vmem:[#allocation4 + $0xc0] sm:$0xff] %v1917
      %1937 = vst [vmem:[#allocation4 + $0xc8] sm:$0xf] %v1918
      %1938 = vst [vmem:[#allocation4 + $0xcc] sm:$0xff] %v1920
      %1939 = vst [vmem:[#allocation4 + $0xd4] sm:$0xf] %v1921
      %1940 = vst [vmem:[#allocation4 + $0xd8] sm:$0xff] %v1923
      %1941 = vst [vmem:[#allocation4 + $0xe0] sm:$0xf] %v1924
      %1942 = vst [vmem:[#allocation4 + $0xe4] sm:$0xff] %v1926
      %1943 = vst [vmem:[#allocation4 + $0xec] sm:$0xf] %v1927
      %v1944 = vld [vmem:[#allocation3] sm:$0xff]
      %v1945 = vld [vmem:[#allocation3 + $0x8] sm:$0xff]
      %v1946 = vld [vmem:[#allocation3 + $0x10] sm:$0xff]
      %v1947 = vld [vmem:[#allocation3 + $0x18] sm:$0xff]
      %v1948 = vld [vmem:[#allocation3 + $0x20] sm:$0xff]
      %v1949 = vld [vmem:[#allocation3 + $0x28] sm:$0xff]
      %v1950 = vld [vmem:[#allocation3 + $0x30] sm:$0xff]
      %v1951 = vld [vmem:[#allocation3 + $0x38] sm:$0xff]
      %1960 = vrot.lane.b32.xlu0 %v1944, 108
      %v1961 = vpop.permute.xlu0 %1960
      %1962 = vrot.lane.b32.xlu0 %v1945, 108
      %v1963 = vpop.permute.xlu0 %1962
      %1964 = vrot.lane.b32.xlu0 %v1946, 108
      %v1965 = vpop.permute.xlu0 %1964
      %1966 = vrot.lane.b32.xlu0 %v1947, 108
      %v1967 = vpop.permute.xlu0 %1966
      %1968 = vrot.lane.b32.xlu0 %v1948, 108
      %v1969 = vpop.permute.xlu0 %1968
      %1970 = vrot.lane.b32.xlu0 %v1949, 108
      %v1971 = vpop.permute.xlu0 %1970
      %1972 = vrot.lane.b32.xlu0 %v1950, 108
      %v1973 = vpop.permute.xlu0 %1972
      %1974 = vrot.lane.b32.xlu0 %v1951, 108
      %v1975 = vpop.permute.xlu0 %1974
      %v1976 = vrot.slane %v1961, 4
      %v1977 = vrot.slane %v1963, 4
      %v1978 = vrot.slane %v1965, 4
      %v1979 = vrot.slane %v1967, 4
      %v1980 = vrot.slane %v1969, 4
      %v1981 = vrot.slane %v1971, 4
      %v1982 = vrot.slane %v1973, 4
      %v1983 = vrot.slane %v1975, 4
      %v1984 = vsel %vm314, %v1976, %v1977
      %v1985 = vsel %vm592, %v1961, %v1984
      %v1986 = vsel %vm592, %v1963, %v1977
      %v1987 = vsel %vm314, %v1978, %v1979
      %v1988 = vsel %vm592, %v1965, %v1987
      %v1989 = vsel %vm592, %v1967, %v1979
      %v1990 = vsel %vm314, %v1980, %v1981
      %v1991 = vsel %vm592, %v1969, %v1990
      %v1992 = vsel %vm592, %v1971, %v1981
      %v1993 = vsel %vm314, %v1982, %v1983
      %v1994 = vsel %vm592, %v1973, %v1993
      %v1995 = vsel %vm592, %v1975, %v1983
      %2004 = vst [vmem:[#allocation4 + $0xf0] sm:$0xff] %v1985
      %2005 = vst [vmem:[#allocation4 + $0xf8] sm:$0xf] %v1986
      %2006 = vst [vmem:[#allocation4 + $0xfc] sm:$0xff] %v1988
      %2007 = vst [vmem:[#allocation4 + $0x104] sm:$0xf] %v1989
      %2008 = vst [vmem:[#allocation4 + $0x108] sm:$0xff] %v1991
      %2009 = vst [vmem:[#allocation4 + $0x110] sm:$0xf] %v1992
      %2010 = vst [vmem:[#allocation4 + $0x114] sm:$0xff] %v1994
      %2011 = vst [vmem:[#allocation4 + $0x11c] sm:$0xf] %v1995
      %v2012 = vld [vmem:[#allocation3] sm:$0xff]
      %v2013 = vld [vmem:[#allocation3 + $0x8] sm:$0xff]
      %v2014 = vld [vmem:[#allocation3 + $0x10] sm:$0xff]
      %v2015 = vld [vmem:[#allocation3 + $0x18] sm:$0xff]
      %v2016 = vld [vmem:[#allocation3 + $0x20] sm:$0xff]
      %v2017 = vld [vmem:[#allocation3 + $0x28] sm:$0xff]
      %v2018 = vld [vmem:[#allocation3 + $0x30] sm:$0xff]
      %v2019 = vld [vmem:[#allocation3 + $0x38] sm:$0xff]
      %2028 = vrot.lane.b32.xlu0 %v2012, 92
      %v2029 = vpop.permute.xlu0 %2028
      %2030 = vrot.lane.b32.xlu0 %v2013, 92
      %v2031 = vpop.permute.xlu0 %2030
      %2032 = vrot.lane.b32.xlu0 %v2014, 92
      %v2033 = vpop.permute.xlu0 %2032
      %2034 = vrot.lane.b32.xlu0 %v2015, 92
      %v2035 = vpop.permute.xlu0 %2034
      %2036 = vrot.lane.b32.xlu0 %v2016, 92
      %v2037 = vpop.permute.xlu0 %2036
      %2038 = vrot.lane.b32.xlu0 %v2017, 92
      %v2039 = vpop.permute.xlu0 %2038
      %2040 = vrot.lane.b32.xlu0 %v2018, 92
      %v2041 = vpop.permute.xlu0 %2040
      %2042 = vrot.lane.b32.xlu0 %v2019, 92
      %v2043 = vpop.permute.xlu0 %2042
      %v2044 = vrot.slane %v2029, 4
      %v2045 = vrot.slane %v2031, 4
      %v2046 = vrot.slane %v2033, 4
      %v2047 = vrot.slane %v2035, 4
      %v2048 = vrot.slane %v2037, 4
      %v2049 = vrot.slane %v2039, 4
      %v2050 = vrot.slane %v2041, 4
      %v2051 = vrot.slane %v2043, 4
      %v2052 = vsel %vm314, %v2044, %v2045
      %v2053 = vsel %vm661, %v2029, %v2052
      %v2054 = vsel %vm661, %v2031, %v2045
      %v2055 = vsel %vm314, %v2046, %v2047
      %v2056 = vsel %vm661, %v2033, %v2055
      %v2057 = vsel %vm661, %v2035, %v2047
      %v2058 = vsel %vm314, %v2048, %v2049
      %v2059 = vsel %vm661, %v2037, %v2058
      %v2060 = vsel %vm661, %v2039, %v2049
      %v2061 = vsel %vm314, %v2050, %v2051
      %v2062 = vsel %vm661, %v2041, %v2061
      %v2063 = vsel %vm661, %v2043, %v2051
      %2072 = vst [vmem:[#allocation4 + $0x120] sm:$0xff] %v2053
      %2073 = vst [vmem:[#allocation4 + $0x128] sm:$0xf] %v2054
      %2074 = vst [vmem:[#allocation4 + $0x12c] sm:$0xff] %v2056
      %2075 = vst [vmem:[#allocation4 + $0x134] sm:$0xf] %v2057
      %2076 = vst [vmem:[#allocation4 + $0x138] sm:$0xff] %v2059
      %2077 = vst [vmem:[#allocation4 + $0x140] sm:$0xf] %v2060
      %2078 = vst [vmem:[#allocation4 + $0x144] sm:$0xff] %v2062
      %2079 = vst [vmem:[#allocation4 + $0x14c] sm:$0xf] %v2063
      %v2080 = vld [vmem:[#allocation3] sm:$0xff]
      %v2081 = vld [vmem:[#allocation3 + $0x8] sm:$0xff]
      %v2082 = vld [vmem:[#allocation3 + $0x10] sm:$0xff]
      %v2083 = vld [vmem:[#allocation3 + $0x18] sm:$0xff]
      %v2084 = vld [vmem:[#allocation3 + $0x20] sm:$0xff]
      %v2085 = vld [vmem:[#allocation3 + $0x28] sm:$0xff]
      %v2086 = vld [vmem:[#allocation3 + $0x30] sm:$0xff]
      %v2087 = vld [vmem:[#allocation3 + $0x38] sm:$0xff]
      %2096 = vrot.lane.b32.xlu0 %v2080, 91
      %v2097 = vpop.permute.xlu0 %2096
      %2098 = vrot.lane.b32.xlu0 %v2081, 91
      %v2099 = vpop.permute.xlu0 %2098
      %2100 = vrot.lane.b32.xlu0 %v2082, 91
      %v2101 = vpop.permute.xlu0 %2100
      %2102 = vrot.lane.b32.xlu0 %v2083, 91
      %v2103 = vpop.permute.xlu0 %2102
      %2104 = vrot.lane.b32.xlu0 %v2084, 91
      %v2105 = vpop.permute.xlu0 %2104
      %2106 = vrot.lane.b32.xlu0 %v2085, 91
      %v2107 = vpop.permute.xlu0 %2106
      %2108 = vrot.lane.b32.xlu0 %v2086, 91
      %v2109 = vpop.permute.xlu0 %2108
      %2110 = vrot.lane.b32.xlu0 %v2087, 91
      %v2111 = vpop.permute.xlu0 %2110
      %v2112 = vrot.slane %v2097, 4
      %v2113 = vrot.slane %v2099, 4
      %v2114 = vrot.slane %v2101, 4
      %v2115 = vrot.slane %v2103, 4
      %v2116 = vrot.slane %v2105, 4
      %v2117 = vrot.slane %v2107, 4
      %v2118 = vrot.slane %v2109, 4
      %v2119 = vrot.slane %v2111, 4
      %v2120 = vsel %vm314, %v2112, %v2113
      %v2121 = vsel %vm730, %v2097, %v2120
      %v2122 = vsel %vm730, %v2099, %v2113
      %v2123 = vsel %vm314, %v2114, %v2115
      %v2124 = vsel %vm730, %v2101, %v2123
      %v2125 = vsel %vm730, %v2103, %v2115
      %v2126 = vsel %vm314, %v2116, %v2117
      %v2127 = vsel %vm730, %v2105, %v2126
      %v2128 = vsel %vm730, %v2107, %v2117
      %v2129 = vsel %vm314, %v2118, %v2119
      %v2130 = vsel %vm730, %v2109, %v2129
      %v2131 = vsel %vm730, %v2111, %v2119
      %2140 = vst [vmem:[#allocation4 + $0x150] sm:$0xff] %v2121
      %2141 = vst [vmem:[#allocation4 + $0x158] sm:$0xf] %v2122
      %2142 = vst [vmem:[#allocation4 + $0x15c] sm:$0xff] %v2124
      %2143 = vst [vmem:[#allocation4 + $0x164] sm:$0xf] %v2125
      %2144 = vst [vmem:[#allocation4 + $0x168] sm:$0xff] %v2127
      %2145 = vst [vmem:[#allocation4 + $0x170] sm:$0xf] %v2128
      %2146 = vst [vmem:[#allocation4 + $0x174] sm:$0xff] %v2130
      %2147 = vst [vmem:[#allocation4 + $0x17c] sm:$0xf] %v2131
      %v2148 = vld [vmem:[#allocation3] sm:$0xff]
      %v2149 = vld [vmem:[#allocation3 + $0x8] sm:$0xff]
      %v2150 = vld [vmem:[#allocation3 + $0x10] sm:$0xff]
      %v2151 = vld [vmem:[#allocation3 + $0x18] sm:$0xff]
      %v2152 = vld [vmem:[#allocation3 + $0x20] sm:$0xff]
      %v2153 = vld [vmem:[#allocation3 + $0x28] sm:$0xff]
      %v2154 = vld [vmem:[#allocation3 + $0x30] sm:$0xff]
      %v2155 = vld [vmem:[#allocation3 + $0x38] sm:$0xff]
      %2164 = vrot.lane.b32.xlu0 %v2148, 90
      %v2165 = vpop.permute.xlu0 %2164
      %2166 = vrot.lane.b32.xlu0 %v2149, 90
      %v2167 = vpop.permute.xlu0 %2166
      %2168 = vrot.lane.b32.xlu0 %v2150, 90
      %v2169 = vpop.permute.xlu0 %2168
      %2170 = vrot.lane.b32.xlu0 %v2151, 90
      %v2171 = vpop.permute.xlu0 %2170
      %2172 = vrot.lane.b32.xlu0 %v2152, 90
      %v2173 = vpop.permute.xlu0 %2172
      %2174 = vrot.lane.b32.xlu0 %v2153, 90
      %v2175 = vpop.permute.xlu0 %2174
      %2176 = vrot.lane.b32.xlu0 %v2154, 90
      %v2177 = vpop.permute.xlu0 %2176
      %2178 = vrot.lane.b32.xlu0 %v2155, 90
      %v2179 = vpop.permute.xlu0 %2178
      %v2180 = vrot.slane %v2165, 4
      %v2181 = vrot.slane %v2167, 4
      %v2182 = vrot.slane %v2169, 4
      %v2183 = vrot.slane %v2171, 4
      %v2184 = vrot.slane %v2173, 4
      %v2185 = vrot.slane %v2175, 4
      %v2186 = vrot.slane %v2177, 4
      %v2187 = vrot.slane %v2179, 4
      %v2188 = vsel %vm314, %v2180, %v2181
      %v2189 = vsel %vm799, %v2165, %v2188
      %v2190 = vsel %vm799, %v2167, %v2181
      %v2191 = vsel %vm314, %v2182, %v2183
      %v2192 = vsel %vm799, %v2169, %v2191
      %v2193 = vsel %vm799, %v2171, %v2183
      %v2194 = vsel %vm314, %v2184, %v2185
      %v2195 = vsel %vm799, %v2173, %v2194
      %v2196 = vsel %vm799, %v2175, %v2185
      %v2197 = vsel %vm314, %v2186, %v2187
      %v2198 = vsel %vm799, %v2177, %v2197
      %v2199 = vsel %vm799, %v2179, %v2187
      %2208 = vst [vmem:[#allocation4 + $0x180] sm:$0xff] %v2189
      %2209 = vst [vmem:[#allocation4 + $0x188] sm:$0xf] %v2190
      %2210 = vst [vmem:[#allocation4 + $0x18c] sm:$0xff] %v2192
      %2211 = vst [vmem:[#allocation4 + $0x194] sm:$0xf] %v2193
      %2212 = vst [vmem:[#allocation4 + $0x198] sm:$0xff] %v2195
      %2213 = vst [vmem:[#allocation4 + $0x1a0] sm:$0xf] %v2196
      %2214 = vst [vmem:[#allocation4 + $0x1a4] sm:$0xff] %v2198
      %2215 = vst [vmem:[#allocation4 + $0x1ac] sm:$0xf] %v2199
      %v2216 = vld [vmem:[%s3] sm:$0xff]
      %v2217 = vld [vmem:[%s3 + $0x8] sm:$0xf]
      %v2218 = vld [vmem:[%s3 + $0xc] sm:$0xff]
      %v2219 = vld [vmem:[%s3 + $0x14] sm:$0xf]
      %v2220 = vld [vmem:[%s3 + $0x18] sm:$0xff]
      %v2221 = vld [vmem:[%s3 + $0x20] sm:$0xf]
      %v2222 = vld [vmem:[%s3 + $0x24] sm:$0xff]
      %v2223 = vld [vmem:[%s3 + $0x2c] sm:$0xf]
      %v2224 = vld [vmem:[#allocation4] sm:$0xff]
      %v2225 = vld [vmem:[#allocation4 + $0x8] sm:$0xf]
      %v2226 = vld [vmem:[#allocation4 + $0xc] sm:$0xff]
      %v2227 = vld [vmem:[#allocation4 + $0x14] sm:$0xf]
      %v2228 = vld [vmem:[#allocation4 + $0x18] sm:$0xff]
      %v2229 = vld [vmem:[#allocation4 + $0x20] sm:$0xf]
      %v2230 = vld [vmem:[#allocation4 + $0x24] sm:$0xff]
      %v2231 = vld [vmem:[#allocation4 + $0x2c] sm:$0xf]
      %v2232 = vld [vmem:[#allocation4 + $0x30] sm:$0xff]
      %v2233 = vld [vmem:[#allocation4 + $0x38] sm:$0xf]
      %v2234 = vld [vmem:[#allocation4 + $0x3c] sm:$0xff]
      %v2235 = vld [vmem:[#allocation4 + $0x44] sm:$0xf]
      %v2236 = vld [vmem:[#allocation4 + $0x48] sm:$0xff]
      %v2237 = vld [vmem:[#allocation4 + $0x50] sm:$0xf]
      %v2238 = vld [vmem:[#allocation4 + $0x54] sm:$0xff]
      %v2239 = vld [vmem:[#allocation4 + $0x5c] sm:$0xf]
      %v2240 = vld [vmem:[#allocation4 + $0x60] sm:$0xff]
      %v2241 = vld [vmem:[#allocation4 + $0x68] sm:$0xf]
      %v2242 = vld [vmem:[#allocation4 + $0x6c] sm:$0xff]
      %v2243 = vld [vmem:[#allocation4 + $0x74] sm:$0xf]
      %v2244 = vld [vmem:[#allocation4 + $0x78] sm:$0xff]
      %v2245 = vld [vmem:[#allocation4 + $0x80] sm:$0xf]
      %v2246 = vld [vmem:[#allocation4 + $0x84] sm:$0xff]
      %v2247 = vld [vmem:[#allocation4 + $0x8c] sm:$0xf]
      %v2248 = vld [vmem:[#allocation4 + $0x90] sm:$0xff]
      %v2249 = vld [vmem:[#allocation4 + $0x98] sm:$0xf]
      %v2250 = vld [vmem:[#allocation4 + $0x9c] sm:$0xff]
      %v2251 = vld [vmem:[#allocation4 + $0xa4] sm:$0xf]
      %v2252 = vld [vmem:[#allocation4 + $0xa8] sm:$0xff]
      %v2253 = vld [vmem:[#allocation4 + $0xb0] sm:$0xf]
      %v2254 = vld [vmem:[#allocation4 + $0xb4] sm:$0xff]
      %v2255 = vld [vmem:[#allocation4 + $0xbc] sm:$0xf]
      %v2256 = vld [vmem:[#allocation4 + $0xc0] sm:$0xff]
      %v2257 = vld [vmem:[#allocation4 + $0xc8] sm:$0xf]
      %v2258 = vld [vmem:[#allocation4 + $0xcc] sm:$0xff]
      %v2259 = vld [vmem:[#allocation4 + $0xd4] sm:$0xf]
      %v2260 = vld [vmem:[#allocation4 + $0xd8] sm:$0xff]
      %v2261 = vld [vmem:[#allocation4 + $0xe0] sm:$0xf]
      %v2262 = vld [vmem:[#allocation4 + $0xe4] sm:$0xff]
      %v2263 = vld [vmem:[#allocation4 + $0xec] sm:$0xf]
      %v2264 = vld [vmem:[#allocation4 + $0xf0] sm:$0xff]
      %v2265 = vld [vmem:[#allocation4 + $0xf8] sm:$0xf]
      %v2266 = vld [vmem:[#allocation4 + $0xfc] sm:$0xff]
      %v2267 = vld [vmem:[#allocation4 + $0x104] sm:$0xf]
      %v2268 = vld [vmem:[#allocation4 + $0x108] sm:$0xff]
      %v2269 = vld [vmem:[#allocation4 + $0x110] sm:$0xf]
      %v2270 = vld [vmem:[#allocation4 + $0x114] sm:$0xff]
      %v2271 = vld [vmem:[#allocation4 + $0x11c] sm:$0xf]
      %v2272 = vld [vmem:[#allocation4 + $0x120] sm:$0xff]
      %v2273 = vld [vmem:[#allocation4 + $0x128] sm:$0xf]
      %v2274 = vld [vmem:[#allocation4 + $0x12c] sm:$0xff]
      %v2275 = vld [vmem:[#allocation4 + $0x134] sm:$0xf]
      %v2276 = vld [vmem:[#allocation4 + $0x138] sm:$0xff]
      %v2277 = vld [vmem:[#allocation4 + $0x140] sm:$0xf]
      %v2278 = vld [vmem:[#allocation4 + $0x144] sm:$0xff]
      %v2279 = vld [vmem:[#allocation4 + $0x14c] sm:$0xf]
      %v2280 = vld [vmem:[#allocation4 + $0x150] sm:$0xff]
      %v2281 = vld [vmem:[#allocation4 + $0x158] sm:$0xf]
      %v2282 = vld [vmem:[#allocation4 + $0x15c] sm:$0xff]
      %v2283 = vld [vmem:[#allocation4 + $0x164] sm:$0xf]
      %v2284 = vld [vmem:[#allocation4 + $0x168] sm:$0xff]
      %v2285 = vld [vmem:[#allocation4 + $0x170] sm:$0xf]
      %v2286 = vld [vmem:[#allocation4 + $0x174] sm:$0xff]
      %v2287 = vld [vmem:[#allocation4 + $0x17c] sm:$0xf]
      %v2288 = vld [vmem:[#allocation4 + $0x180] sm:$0xff]
      %v2289 = vld [vmem:[#allocation4 + $0x188] sm:$0xf]
      %v2290 = vld [vmem:[#allocation4 + $0x18c] sm:$0xff]
      %v2291 = vld [vmem:[#allocation4 + $0x194] sm:$0xf]
      %v2292 = vld [vmem:[#allocation4 + $0x198] sm:$0xff]
      %v2293 = vld [vmem:[#allocation4 + $0x1a0] sm:$0xf]
      %v2294 = vld [vmem:[#allocation4 + $0x1a4] sm:$0xff]
      %v2295 = vld [vmem:[#allocation4 + $0x1ac] sm:$0xf]
      %v2296 = vld [vmem:[%s4] sm:$0xff]
      %v2297 = vld [vmem:[%s4 + $0x8] sm:$0xff]
      %v2298 = vld [vmem:[%s4 + $0x10] sm:$0xff]
      %v2299 = vld [vmem:[%s4 + $0x18] sm:$0xff]
      %2301 = vset.pattern.permute.xlu0 0
      %2302 = vperm.xlu0 %2301, %v2296
      %v2303 = vpop.permute.xlu0 %2302
      %2306 = vset.pattern.permute.xlu0 0
      %2307 = vperm.xlu0 %2306, %v2297
      %v2308 = vpop.permute.xlu0 %2307
      %2311 = vset.pattern.permute.xlu0 0
      %2312 = vperm.xlu0 %2311, %v2298
      %v2313 = vpop.permute.xlu0 %2312
      %2316 = vset.pattern.permute.xlu0 0
      %2317 = vperm.xlu0 %2316, %v2299
      %v2318 = vpop.permute.xlu0 %2317
      %v2328 = vunpack.c.l.b16 %v2216
      %v2329 = vunpack.c.h.b16 %v2216
      %v2330 = vunpack.c.l.b16 %v2217
      %v2331 = vunpack.c.l.b16 %v2218
      %v2332 = vunpack.c.h.b16 %v2218
      %v2333 = vunpack.c.l.b16 %v2219
      %v2334 = vunpack.c.l.b16 %v2220
      %v2335 = vunpack.c.h.b16 %v2220
      %v2336 = vunpack.c.l.b16 %v2221
      %v2337 = vunpack.c.l.b16 %v2222
      %v2338 = vunpack.c.h.b16 %v2222
      %v2339 = vunpack.c.l.b16 %v2223
      %v2340 = vpack.c.b16 %v2331, %v2328
      %v2341 = vpack.c.b16 %v2332, %v2329
      %v2342 = vpack.c.b16 %v2333, %v2330
      %v2343 = vpack.c.b16 %v2337, %v2334
      %v2344 = vpack.c.b16 %v2338, %v2335
      %v2345 = vpack.c.b16 %v2339, %v2336
      %v2422 = vunpack.c.l.b16 %v2224
      %v2423 = vunpack.c.h.b16 %v2224
      %v2424 = vunpack.c.l.b16 %v2225
      %v2425 = vunpack.c.l.b16 %v2226
      %v2426 = vunpack.c.h.b16 %v2226
      %v2427 = vunpack.c.l.b16 %v2227
      %v2428 = vunpack.c.l.b16 %v2228
      %v2429 = vunpack.c.h.b16 %v2228
      %v2430 = vunpack.c.l.b16 %v2229
      %v2431 = vunpack.c.l.b16 %v2230
      %v2432 = vunpack.c.h.b16 %v2230
      %v2433 = vunpack.c.l.b16 %v2231
      %v2434 = vunpack.c.l.b16 %v2232
      %v2435 = vunpack.c.h.b16 %v2232
      %v2436 = vunpack.c.l.b16 %v2233
      %v2437 = vunpack.c.l.b16 %v2234
      %v2438 = vunpack.c.h.b16 %v2234
      %v2439 = vunpack.c.l.b16 %v2235
      %v2440 = vunpack.c.l.b16 %v2236
      %v2441 = vunpack.c.h.b16 %v2236
      %v2442 = vunpack.c.l.b16 %v2237
      %v2443 = vunpack.c.l.b16 %v2238
      %v2444 = vunpack.c.h.b16 %v2238
      %v2445 = vunpack.c.l.b16 %v2239
      %v2446 = vunpack.c.l.b16 %v2240
      %v2447 = vunpack.c.h.b16 %v2240
      %v2448 = vunpack.c.l.b16 %v2241
      %v2449 = vunpack.c.l.b16 %v2242
      %v2450 = vunpack.c.h.b16 %v2242
      %v2451 = vunpack.c.l.b16 %v2243
      %v2452 = vunpack.c.l.b16 %v2244
      %v2453 = vunpack.c.h.b16 %v2244
      %v2454 = vunpack.c.l.b16 %v2245
      %v2455 = vunpack.c.l.b16 %v2246
      %v2456 = vunpack.c.h.b16 %v2246
      %v2457 = vunpack.c.l.b16 %v2247
      %v2458 = vunpack.c.l.b16 %v2248
      %v2459 = vunpack.c.h.b16 %v2248
      %v2460 = vunpack.c.l.b16 %v2249
      %v2461 = vunpack.c.l.b16 %v2250
      %v2462 = vunpack.c.h.b16 %v2250
      %v2463 = vunpack.c.l.b16 %v2251
      %v2464 = vunpack.c.l.b16 %v2252
      %v2465 = vunpack.c.h.b16 %v2252
      %v2466 = vunpack.c.l.b16 %v2253
      %v2467 = vunpack.c.l.b16 %v2254
      %v2468 = vunpack.c.h.b16 %v2254
      %v2469 = vunpack.c.l.b16 %v2255
      %v2470 = vunpack.c.l.b16 %v2256
      %v2471 = vunpack.c.h.b16 %v2256
      %v2472 = vunpack.c.l.b16 %v2257
      %v2473 = vunpack.c.l.b16 %v2258
      %v2474 = vunpack.c.h.b16 %v2258
      %v2475 = vunpack.c.l.b16 %v2259
      %v2476 = vunpack.c.l.b16 %v2260
      %v2477 = vunpack.c.h.b16 %v2260
      %v2478 = vunpack.c.l.b16 %v2261
      %v2479 = vunpack.c.l.b16 %v2262
      %v2480 = vunpack.c.h.b16 %v2262
      %v2481 = vunpack.c.l.b16 %v2263
      %v2482 = vunpack.c.l.b16 %v2264
      %v2483 = vunpack.c.h.b16 %v2264
      %v2484 = vunpack.c.l.b16 %v2265
      %v2485 = vunpack.c.l.b16 %v2266
      %v2486 = vunpack.c.h.b16 %v2266
      %v2487 = vunpack.c.l.b16 %v2267
      %v2488 = vunpack.c.l.b16 %v2268
      %v2489 = vunpack.c.h.b16 %v2268
      %v2490 = vunpack.c.l.b16 %v2269
      %v2491 = vunpack.c.l.b16 %v2270
      %v2492 = vunpack.c.h.b16 %v2270
      %v2493 = vunpack.c.l.b16 %v2271
      %v2494 = vunpack.c.l.b16 %v2272
      %v2495 = vunpack.c.h.b16 %v2272
      %v2496 = vunpack.c.l.b16 %v2273
      %v2497 = vunpack.c.l.b16 %v2274
      %v2498 = vunpack.c.h.b16 %v2274
      %v2499 = vunpack.c.l.b16 %v2275
      %v2500 = vunpack.c.l.b16 %v2276
      %v2501 = vunpack.c.h.b16 %v2276
      %v2502 = vunpack.c.l.b16 %v2277
      %v2503 = vunpack.c.l.b16 %v2278
      %v2504 = vunpack.c.h.b16 %v2278
      %v2505 = vunpack.c.l.b16 %v2279
      %v2506 = vunpack.c.l.b16 %v2280
      %v2507 = vunpack.c.h.b16 %v2280
      %v2508 = vunpack.c.l.b16 %v2281
      %v2509 = vunpack.c.l.b16 %v2282
      %v2510 = vunpack.c.h.b16 %v2282
      %v2511 = vunpack.c.l.b16 %v2283
      %v2512 = vunpack.c.l.b16 %v2284
      %v2513 = vunpack.c.h.b16 %v2284
      %v2514 = vunpack.c.l.b16 %v2285
      %v2515 = vunpack.c.l.b16 %v2286
      %v2516 = vunpack.c.h.b16 %v2286
      %v2517 = vunpack.c.l.b16 %v2287
      %v2518 = vunpack.c.l.b16 %v2288
      %v2519 = vunpack.c.h.b16 %v2288
      %v2520 = vunpack.c.l.b16 %v2289
      %v2521 = vunpack.c.l.b16 %v2290
      %v2522 = vunpack.c.h.b16 %v2290
      %v2523 = vunpack.c.l.b16 %v2291
      %v2524 = vunpack.c.l.b16 %v2292
      %v2525 = vunpack.c.h.b16 %v2292
      %v2526 = vunpack.c.l.b16 %v2293
      %v2527 = vunpack.c.l.b16 %v2294
      %v2528 = vunpack.c.h.b16 %v2294
      %v2529 = vunpack.c.l.b16 %v2295
      %v2530 = vpack.c.b16 %v2425, %v2422
      %v2531 = vpack.c.b16 %v2426, %v2423
      %v2532 = vpack.c.b16 %v2427, %v2424
      %v2533 = vpack.c.b16 %v2431, %v2428
      %v2534 = vpack.c.b16 %v2432, %v2429
      %v2535 = vpack.c.b16 %v2433, %v2430
      %v2536 = vpack.c.b16 %v2437, %v2434
      %v2537 = vpack.c.b16 %v2438, %v2435
      %v2538 = vpack.c.b16 %v2439, %v2436
      %v2539 = vpack.c.b16 %v2443, %v2440
      %v2540 = vpack.c.b16 %v2444, %v2441
      %v2541 = vpack.c.b16 %v2445, %v2442
      %v2542 = vpack.c.b16 %v2449, %v2446
      %v2543 = vpack.c.b16 %v2450, %v2447
      %v2544 = vpack.c.b16 %v2451, %v2448
      %v2545 = vpack.c.b16 %v2455, %v2452
      %v2546 = vpack.c.b16 %v2456, %v2453
      %v2547 = vpack.c.b16 %v2457, %v2454
      %v2548 = vpack.c.b16 %v2461, %v2458
      %v2549 = vpack.c.b16 %v2462, %v2459
      %v2550 = vpack.c.b16 %v2463, %v2460
      %v2551 = vpack.c.b16 %v2467, %v2464
      %v2552 = vpack.c.b16 %v2468, %v2465
      %v2553 = vpack.c.b16 %v2469, %v2466
      %v2554 = vpack.c.b16 %v2473, %v2470
      %v2555 = vpack.c.b16 %v2474, %v2471
      %v2556 = vpack.c.b16 %v2475, %v2472
      %v2557 = vpack.c.b16 %v2479, %v2476
      %v2558 = vpack.c.b16 %v2480, %v2477
      %v2559 = vpack.c.b16 %v2481, %v2478
      %v2560 = vpack.c.b16 %v2485, %v2482
      %v2561 = vpack.c.b16 %v2486, %v2483
      %v2562 = vpack.c.b16 %v2487, %v2484
      %v2563 = vpack.c.b16 %v2491, %v2488
      %v2564 = vpack.c.b16 %v2492, %v2489
      %v2565 = vpack.c.b16 %v2493, %v2490
      %v2566 = vpack.c.b16 %v2497, %v2494
      %v2567 = vpack.c.b16 %v2498, %v2495
      %v2568 = vpack.c.b16 %v2499, %v2496
      %v2569 = vpack.c.b16 %v2503, %v2500
      %v2570 = vpack.c.b16 %v2504, %v2501
      %v2571 = vpack.c.b16 %v2505, %v2502
      %v2572 = vpack.c.b16 %v2509, %v2506
      %v2573 = vpack.c.b16 %v2510, %v2507
      %v2574 = vpack.c.b16 %v2511, %v2508
      %v2575 = vpack.c.b16 %v2515, %v2512
      %v2576 = vpack.c.b16 %v2516, %v2513
      %v2577 = vpack.c.b16 %v2517, %v2514
      %v2578 = vpack.c.b16 %v2521, %v2518
      %v2579 = vpack.c.b16 %v2522, %v2519
      %v2580 = vpack.c.b16 %v2523, %v2520
      %v2581 = vpack.c.b16 %v2527, %v2524
      %v2582 = vpack.c.b16 %v2528, %v2525
      %v2583 = vpack.c.b16 %v2529, %v2526
      %v2639 = vsel %vm1370, %v2342, 0
      %v2642 = vsel %vm1370, %v2345, 0
      %2644 = vmatpush.bf16.msra.mxu0 %v2551
      %2645 = vmatpush.bf16.msra.mxu0 %v2548
      %2646 = vmatpush.bf16.msra.mxu0 %v2545
      %2647 = vmatpush.bf16.msra.mxu0 %v2542
      %2648 = vmatpush.bf16.msra.mxu0 %v2539
      %2649 = vmatpush.bf16.msra.mxu0 %v2536
      %2650 = vmatpush.bf16.msra.mxu0 %v2533
      %2651 = vmatpush.bf16.msra.mxu0 %v2530
      %2652 = vmatmul.bf16.gmra.mxu0 %v2340
      %v2653 = vpop.f32.mrf.mxu0
      %v2654 = vadd.f32 %v2303, %v2653
      %v2655 = vpop.f32.mrf.mxu0
      %v2656 = vadd.f32 %v2308, %v2655
      %2657 = vmatmul.bf16.gmra.mxu0 %v2343
      %v2658 = vpop.f32.mrf.mxu0
      %v2659 = vadd.f32 %v2313, %v2658
      %v2660 = vpop.f32.mrf.mxu0
      %v2661 = vadd.f32 %v2318, %v2660
      %2662 = vdwg.mxu0
      %2663 = vmatpush.bf16.msra.mxu0 %v2575
      %2664 = vmatpush.bf16.msra.mxu0 %v2572
      %2665 = vmatpush.bf16.msra.mxu0 %v2569
      %2666 = vmatpush.bf16.msra.mxu0 %v2566
      %2667 = vmatpush.bf16.msra.mxu0 %v2563
      %2668 = vmatpush.bf16.msra.mxu0 %v2560
      %2669 = vmatpush.bf16.msra.mxu0 %v2557
      %2670 = vmatpush.bf16.msra.mxu0 %v2554
      %2671 = vmatmul.bf16.gmra.mxu0 %v2341
      %v2672 = vpop.f32.mrf.mxu0
      %v2673 = vadd.f32 %v2654, %v2672
      %v2674 = vpop.f32.mrf.mxu0
      %v2675 = vadd.f32 %v2656, %v2674
      %2676 = vmatmul.bf16.gmra.mxu0 %v2344
      %v2677 = vpop.f32.mrf.mxu0
      %v2678 = vadd.f32 %v2659, %v2677
      %v2679 = vpop.f32.mrf.mxu0
      %v2680 = vadd.f32 %v2661, %v2679
      %2681 = vdwg.mxu0
      %2682 = vmatpush.bf16.msra.mxu0 0
      %2683 = vmatpush.bf16.msra.mxu0 0
      %2684 = vmatpush.bf16.msra.mxu0 0
      %2685 = vmatpush.bf16.msra.mxu0 0
      %2686 = vmatpush.bf16.msra.mxu0 0
      %2687 = vmatpush.bf16.msra.mxu0 0
      %2688 = vmatpush.bf16.msra.mxu0 %v2581
      %2689 = vmatpush.bf16.msra.mxu0 %v2578
      %2690 = vmatmul.bf16.gmra.mxu0 %v2639
      %v2691 = vpop.f32.mrf.mxu0
      %v2692 = vadd.f32 %v2673, %v2691
      %v2693 = vpop.f32.mrf.mxu0
      %v2694 = vadd.f32 %v2675, %v2693
      %2695 = vmatmul.bf16.gmra.mxu0 %v2642
      %v2696 = vpop.f32.mrf.mxu0
      %v2697 = vadd.f32 %v2678, %v2696
      %v2698 = vpop.f32.mrf.mxu0
      %v2699 = vadd.f32 %v2680, %v2698
      %2700 = vdwg.mxu0
      %2701 = vmatpush.bf16.msra.mxu0 %v2552
      %2702 = vmatpush.bf16.msra.mxu0 %v2549
      %2703 = vmatpush.bf16.msra.mxu0 %v2546
      %2704 = vmatpush.bf16.msra.mxu0 %v2543
      %2705 = vmatpush.bf16.msra.mxu0 %v2540
      %2706 = vmatpush.bf16.msra.mxu0 %v2537
      %2707 = vmatpush.bf16.msra.mxu0 %v2534
      %2708 = vmatpush.bf16.msra.mxu0 %v2531
      %2709 = vmatmul.bf16.gmra.mxu0 %v2340
      %v2710 = vpop.f32.mrf.mxu0
      %v2711 = vadd.f32 %v2303, %v2710
      %v2712 = vpop.f32.mrf.mxu0
      %v2713 = vadd.f32 %v2308, %v2712
      %2714 = vmatmul.bf16.gmra.mxu0 %v2343
      %v2715 = vpop.f32.mrf.mxu0
      %v2716 = vadd.f32 %v2313, %v2715
      %v2717 = vpop.f32.mrf.mxu0
      %v2718 = vadd.f32 %v2318, %v2717
      %2719 = vdwg.mxu0
      %2720 = vmatpush.bf16.msra.mxu0 %v2576
      %2721 = vmatpush.bf16.msra.mxu0 %v2573
      %2722 = vmatpush.bf16.msra.mxu0 %v2570
      %2723 = vmatpush.bf16.msra.mxu0 %v2567
      %2724 = vmatpush.bf16.msra.mxu0 %v2564
      %2725 = vmatpush.bf16.msra.mxu0 %v2561
      %2726 = vmatpush.bf16.msra.mxu0 %v2558
      %2727 = vmatpush.bf16.msra.mxu0 %v2555
      %2728 = vmatmul.bf16.gmra.mxu0 %v2341
      %v2729 = vpop.f32.mrf.mxu0
      %v2730 = vadd.f32 %v2711, %v2729
      %v2731 = vpop.f32.mrf.mxu0
      %v2732 = vadd.f32 %v2713, %v2731
      %2733 = vmatmul.bf16.gmra.mxu0 %v2344
      %v2734 = vpop.f32.mrf.mxu0
      %v2735 = vadd.f32 %v2716, %v2734
      %v2736 = vpop.f32.mrf.mxu0
      %v2737 = vadd.f32 %v2718, %v2736
      %2738 = vdwg.mxu0
      %2739 = vmatpush.bf16.msra.mxu0 0
      %2740 = vmatpush.bf16.msra.mxu0 0
      %2741 = vmatpush.bf16.msra.mxu0 0
      %2742 = vmatpush.bf16.msra.mxu0 0
      %2743 = vmatpush.bf16.msra.mxu0 0
      %2744 = vmatpush.bf16.msra.mxu0 0
      %2745 = vmatpush.bf16.msra.mxu0 %v2582
      %2746 = vmatpush.bf16.msra.mxu0 %v2579
      %2747 = vmatmul.bf16.gmra.mxu0 %v2639
      %v2748 = vpop.f32.mrf.mxu0
      %v2749 = vadd.f32 %v2730, %v2748
      %v2750 = vpop.f32.mrf.mxu0
      %v2751 = vadd.f32 %v2732, %v2750
      %2752 = vmatmul.bf16.gmra.mxu0 %v2642
      %v2753 = vpop.f32.mrf.mxu0
      %v2754 = vadd.f32 %v2735, %v2753
      %v2755 = vpop.f32.mrf.mxu0
      %v2756 = vadd.f32 %v2737, %v2755
      %2757 = vdwg.mxu0
      %2758 = vmatpush.bf16.msra.mxu0 %v2553
      %2759 = vmatpush.bf16.msra.mxu0 %v2550
      %2760 = vmatpush.bf16.msra.mxu0 %v2547
      %2761 = vmatpush.bf16.msra.mxu0 %v2544
      %2762 = vmatpush.bf16.msra.mxu0 %v2541
      %2763 = vmatpush.bf16.msra.mxu0 %v2538
      %2764 = vmatpush.bf16.msra.mxu0 %v2535
      %2765 = vmatpush.bf16.msra.mxu0 %v2532
      %2766 = vmatmul.bf16.gmra.mxu0 %v2340
      %v2767 = vpop.f32.mrf.mxu0
      %v2768 = vadd.f32 %v2303, %v2767
      %v2769 = vpop.f32.mrf.mxu0
      %v2770 = vadd.f32 %v2308, %v2769
      %2771 = vmatmul.bf16.gmra.mxu0 %v2343
      %v2772 = vpop.f32.mrf.mxu0
      %v2773 = vadd.f32 %v2313, %v2772
      %v2774 = vpop.f32.mrf.mxu0
      %v2775 = vadd.f32 %v2318, %v2774
      %2776 = vdwg.mxu0
      %2777 = vmatpush.bf16.msra.mxu0 %v2577
      %2778 = vmatpush.bf16.msra.mxu0 %v2574
      %2779 = vmatpush.bf16.msra.mxu0 %v2571
      %2780 = vmatpush.bf16.msra.mxu0 %v2568
      %2781 = vmatpush.bf16.msra.mxu0 %v2565
      %2782 = vmatpush.bf16.msra.mxu0 %v2562
      %2783 = vmatpush.bf16.msra.mxu0 %v2559
      %2784 = vmatpush.bf16.msra.mxu0 %v2556
      %2785 = vmatmul.bf16.gmra.mxu0 %v2341
      %v2786 = vpop.f32.mrf.mxu0
      %v2787 = vadd.f32 %v2768, %v2786
      %v2788 = vpop.f32.mrf.mxu0
      %v2789 = vadd.f32 %v2770, %v2788
      %2790 = vmatmul.bf16.gmra.mxu0 %v2344
      %v2791 = vpop.f32.mrf.mxu0
      %v2792 = vadd.f32 %v2773, %v2791
      %v2793 = vpop.f32.mrf.mxu0
      %v2794 = vadd.f32 %v2775, %v2793
      %2795 = vdwg.mxu0
      %2796 = vmatpush.bf16.msra.mxu0 0
      %2797 = vmatpush.bf16.msra.mxu0 0
      %2798 = vmatpush.bf16.msra.mxu0 0
      %2799 = vmatpush.bf16.msra.mxu0 0
      %2800 = vmatpush.bf16.msra.mxu0 0
      %2801 = vmatpush.bf16.msra.mxu0 0
      %2802 = vmatpush.bf16.msra.mxu0 %v2583
      %2803 = vmatpush.bf16.msra.mxu0 %v2580
      %2804 = vmatmul.bf16.gmra.mxu0 %v2639
      %v2805 = vpop.f32.mrf.mxu0
      %v2806 = vadd.f32 %v2787, %v2805
      %v2807 = vpop.f32.mrf.mxu0
      %v2808 = vadd.f32 %v2789, %v2807
      %2809 = vmatmul.bf16.gmra.mxu0 %v2642
      %v2810 = vpop.f32.mrf.mxu0
      %v2811 = vadd.f32 %v2792, %v2810
      %v2812 = vpop.f32.mrf.mxu0
      %v2813 = vadd.f32 %v2794, %v2812
      %2814 = vdwg.mxu0
      %v2815 = vld [vmem:[%s219] sm:$0xff]
      %v2816 = vld [vmem:[%s219 + $0x8] sm:$0xff]
      %v2817 = vld [vmem:[%s219 + $0x10] sm:$0xff]
      %v2818 = vld [vmem:[%s219 + $0x18] sm:$0xff]
      %v2819 = vld [vmem:[%s219 + $0x20] sm:$0xff]
      %v2820 = vld [vmem:[%s219 + $0x28] sm:$0xff]
      %v2821 = vld [vmem:[%s219 + $0x30] sm:$0xff]
      %v2822 = vld [vmem:[%s219 + $0x38] sm:$0xff]
      %v2823 = vld [vmem:[%s219 + $0x40] sm:$0xff]
      %v2824 = vld [vmem:[%s219 + $0x48] sm:$0xff]
      %v2825 = vld [vmem:[%s219 + $0x50] sm:$0xff]
      %v2826 = vld [vmem:[%s219 + $0x58] sm:$0xff]
      %v2827 = vld [vmem:[%s219 + $0x60] sm:$0xff]
      %v2828 = vld [vmem:[%s219 + $0x68] sm:$0xff]
      %v2829 = vld [vmem:[%s219 + $0x70] sm:$0xff]
      %v2830 = vld [vmem:[%s219 + $0x78] sm:$0xff]
      %v2831 = vmul.f32 %v2692, 0.1
      %v2832 = vmul.f32 %v2749, 0.1
      %v2833 = vmul.f32 %v2806, 0.1
      %v2834 = vmul.f32 %v2694, 0.1
      %v2835 = vmul.f32 %v2751, 0.1
      %v2836 = vmul.f32 %v2808, 0.1
      %v2837 = vmul.f32 %v2697, 0.1
      %v2838 = vmul.f32 %v2754, 0.1
      %v2839 = vmul.f32 %v2811, 0.1
      %v2840 = vmul.f32 %v2699, 0.1
      %v2841 = vmul.f32 %v2756, 0.1
      %v2842 = vmul.f32 %v2813, 0.1
      %2859 = vrot.lane.b32.xlu0 %v2815, 109
      %v2860 = vpop.permute.xlu0 %2859
      %2861 = vrot.lane.b32.xlu0 %v2816, 109
      %v2862 = vpop.permute.xlu0 %2861
      %2863 = vrot.lane.b32.xlu0 %v2817, 109
      %v2864 = vpop.permute.xlu0 %2863
      %2865 = vrot.lane.b32.xlu0 %v2818, 109
      %v2866 = vpop.permute.xlu0 %2865
      %2867 = vrot.lane.b32.xlu0 %v2819, 109
      %v2868 = vpop.permute.xlu0 %2867
      %2869 = vrot.lane.b32.xlu0 %v2820, 109
      %v2870 = vpop.permute.xlu0 %2869
      %2871 = vrot.lane.b32.xlu0 %v2821, 109
      %v2872 = vpop.permute.xlu0 %2871
      %2873 = vrot.lane.b32.xlu0 %v2822, 109
      %v2874 = vpop.permute.xlu0 %2873
      %2875 = vrot.lane.b32.xlu0 %v2823, 109
      %v2876 = vpop.permute.xlu0 %2875
      %2877 = vrot.lane.b32.xlu0 %v2824, 109
      %v2878 = vpop.permute.xlu0 %2877
      %2879 = vrot.lane.b32.xlu0 %v2825, 109
      %v2880 = vpop.permute.xlu0 %2879
      %2881 = vrot.lane.b32.xlu0 %v2826, 109
      %v2882 = vpop.permute.xlu0 %2881
      %2883 = vrot.lane.b32.xlu0 %v2827, 109
      %v2884 = vpop.permute.xlu0 %2883
      %2885 = vrot.lane.b32.xlu0 %v2828, 109
      %v2886 = vpop.permute.xlu0 %2885
      %2887 = vrot.lane.b32.xlu0 %v2829, 109
      %v2888 = vpop.permute.xlu0 %2887
      %2889 = vrot.lane.b32.xlu0 %v2830, 109
      %v2890 = vpop.permute.xlu0 %2889
      %vm2891 = vcmask 891904
      %v2892 = vsel %vm2891, %v2860, %v2862
      %v2893 = vsel %vm2891, %v2862, %v2864
      %v2894 = vsel %vm2891, %v2864, %v2866
      %v2895 = vsel %vm2891, %v2868, %v2870
      %v2896 = vsel %vm2891, %v2870, %v2872
      %v2897 = vsel %vm2891, %v2872, %v2874
      %v2898 = vsel %vm2891, %v2876, %v2878
      %v2899 = vsel %vm2891, %v2878, %v2880
      %v2900 = vsel %vm2891, %v2880, %v2882
      %v2901 = vsel %vm2891, %v2884, %v2886
      %v2902 = vsel %vm2891, %v2886, %v2888
      %v2903 = vsel %vm2891, %v2888, %v2890
      %v2916 = vadd.f32 %v2831, %v2892
      %v2917 = vadd.f32 %v2832, %v2893
      %v2918 = vadd.f32 %v2833, %v2894
      %v2919 = vadd.f32 %v2834, %v2895
      %v2920 = vadd.f32 %v2835, %v2896
      %v2921 = vadd.f32 %v2836, %v2897
      %v2922 = vadd.f32 %v2837, %v2898
      %v2923 = vadd.f32 %v2838, %v2899
      %v2924 = vadd.f32 %v2839, %v2900
      %v2925 = vadd.f32 %v2840, %v2901
      %v2926 = vadd.f32 %v2841, %v2902
      %v2927 = vadd.f32 %v2842, %v2903
      %2928 = vst [vmem:[%s224] sm:$0xff] %v2916
      %2929 = vst [vmem:[%s224 + $0x8] sm:$0xff] %v2917
      %2930 = vst [vmem:[%s224 + $0x10] sm:$0xff] %v2918
      %2931 = vst [vmem:[%s224 + $0x18] sm:$0xff] %v2919
      %2932 = vst [vmem:[%s224 + $0x20] sm:$0xff] %v2920
      %2933 = vst [vmem:[%s224 + $0x28] sm:$0xff] %v2921
      %2934 = vst [vmem:[%s224 + $0x30] sm:$0xff] %v2922
      %2935 = vst [vmem:[%s224 + $0x38] sm:$0xff] %v2923
      %2936 = vst [vmem:[%s224 + $0x40] sm:$0xff] %v2924
      %2937 = vst [vmem:[%s224 + $0x48] sm:$0xff] %v2925
      %2938 = vst [vmem:[%s224 + $0x50] sm:$0xff] %v2926
      %2939 = vst [vmem:[%s224 + $0x58] sm:$0xff] %v2927
      %p2940 = scmp.lt.s32.totalorder %s16, 1
      %s2941 = scalar_select %p2940, %s16, 1
      %s2942 = smul.addr %s2941, 12
      %s2943 = smul.addr %s2942, 8
      %s2944 = scalar_lea.vmem %s5, %s2943
      // Predicated region
      $region41: #{resblock_forward.1} parent=39 // pred_check
        %p2945 = pneg %p144
      $region42: #{resblock_forward.1} parent=39 // pred_check_branch
        %2947 = sbr.rel (%p2945) target = $region44
      $region43: #{resblock_forward.1} parent=39 // pred_region
        _
      $region44: #{resblock_forward.1} parent=39 // pred_fallthru
        _
    $region40: #{resblock_forward.1} parent=5 // pred_fallthru
      _
    %p2948 = scmp.le.s32.totalorder 2, %s11
    // Predicated region
    $region45: #{resblock_forward.1} parent=5 // pred_check
      %p2949 = pneg %p2948
    $region46: #{resblock_forward.1} parent=5 // pred_check_branch
      %2951 = sbr.rel (%p2949) target = $region48
    $region47: #{resblock_forward.1} parent=5 // pred_region
      %s2952 = ssub.s32 %s11, 2
      // Predicated region
      $region49: #{resblock_forward.1} parent=47 // pred_check
        %p2953 = pneg %p150
      $region50: #{resblock_forward.1} parent=47 // pred_check_branch
        %2955 = sbr.rel (%p2953) target = $region52
      $region51: #{resblock_forward.1} parent=47 // pred_region
        %p2956 = scmp.lt.s32.totalorder %s17, 1
        %s2957 = scalar_select %p2956, %s17, 1
        %s2958 = smul.addr %s2957, 12
        %s2959 = smul.addr %s2958, 8
        %s2960 = scalar_lea.vmem %s5, %s2959
      $region52: #{resblock_forward.1} parent=47 // pred_fallthru
        _
    $region48: #{resblock_forward.1} parent=5 // pred_fallthru
      _
  $region6: #{resblock_forward.1} parent=0 // loop_footer
    %s15 = sadd.s32 1, %s11
  $region7: #{resblock_forward.1} parent=0 // loop_footer_branch
    %10 = sbr.rel target = $region3
  $region8: #{resblock_forward.1} parent=0 // loop_exit
    _

</llo_original>
